<compile_context>
chip_gen: v7x
topology: tpu7x:2x2x1
jax: 0.10.0
libtpu: 0.0.40
codegen_flags: <defaults>
</compile_context>

<pallas_src>
import jax
import jax.numpy as jnp
from jax.experimental import pallas as pl
from jax.experimental.pallas import tpu as pltpu

SEQ_LEN = 8
DIM_AUD = 64
CONV_CHANNELS = [DIM_AUD, 16, 8, 4, 2, 1]
LEAKY_SLOPE = 0.02
SLAB_LANES = 16  # widest weight column-group (conv1 Cout=16); keeps the slab lane-compact

# ---------- packed-parameter slab layout: rows of a (SLAB_ROWS, 16) f32 array ----------
# Conv weights, matmul-ready: rows [off + tap*Cin + cin], lanes [0:Cout].
W_OFFS = []
_o = 0
for _cin in CONV_CHANNELS[:5]:
    W_OFFS.append(_o)
    _o += 3 * _cin
WL_OFF = _o; _o += SEQ_LEN          # Linear weight, transposed: slab[i, j] = WL[j, i]
B_OFF = _o; _o += 6                 # bias rows: b1, b2, b3, b4, b5, bl
SLAB_ROWS = _o                      # 296 (multiple of 8)


def pack_params(params):
    """One-time host-side packing of all weights/biases into a lane-compact slab."""
    def pad_lanes(a):
        a = jnp.asarray(a, jnp.float32)
        return jnp.pad(a, ((0, 0), (0, SLAB_LANES - a.shape[1])))

    blocks = []
    # Convs: torch layout (Cout, Cin, 3) -> (3*Cin, Cout), row = tap*Cin + cin.
    for li in range(5):
        w, _ = params["convs"][li]
        cout, cin, _k = w.shape
        blocks.append(pad_lanes(jnp.transpose(w, (2, 1, 0)).reshape(3 * cin, cout)))
    # Linear weight, pre-transposed so the in-kernel contraction runs over sublanes.
    wl, bl = params["linear"]
    blocks.append(pad_lanes(jnp.asarray(wl, jnp.float32).T))
    # Biases: one row each (b1..b5, bl).
    brows = [pad_lanes(jnp.asarray(b, jnp.float32).reshape(1, -1))
             for b in [params["convs"][i][1] for i in range(5)] + [bl]]
    blocks.append(jnp.concatenate(brows, axis=0))

    slab = jnp.concatenate(blocks, axis=0)
    assert slab.shape == (SLAB_ROWS, SLAB_LANES)
    return slab


def audio_att_kernel(x_ref, p_ref, out_ref):
    L = SEQ_LEN
    x = x_ref[0]                                          # (L, DIM_AUD) f32

    # Edge masks for the k=3 / padding=1 shifts, built once and reused.
    rows = jax.lax.broadcasted_iota(jnp.int32, (L, 1), 0)
    first_row = rows == 0
    last_row = rows == L - 1

    def leaky(v):
        return jnp.where(v > 0, v, LEAKY_SLOPE * v)

    def shift_prev(v):                                    # row l -> v[l-1], row 0 -> 0
        return jnp.where(first_row, 0.0, pltpu.roll(v, 1, axis=0))

    def shift_next(v):                                    # row l -> v[l+1], row L-1 -> 0
        return jnp.where(last_row, 0.0, pltpu.roll(v, L - 1, axis=0))

    def bias(i, n):
        return p_ref[B_OFF + i:B_OFF + i + 1, 0:n]        # (1, n)

    def conv(y, layer):
        # k=3 / padding=1 conv as three accumulating per-tap MXU matmuls
        # (no lane concatenate; K stays <= 64).
        cin, cout = CONV_CHANNELS[layer], CONV_CHANNELS[layer + 1]
        off = W_OFFS[layer]
        w_prev = p_ref[off:off + cin, 0:cout]
        w_cur = p_ref[off + cin:off + 2 * cin, 0:cout]
        w_next = p_ref[off + 2 * cin:off + 3 * cin, 0:cout]
        acc = jnp.dot(shift_prev(y), w_prev, preferred_element_type=jnp.float32)
        acc = acc + jnp.dot(y, w_cur, preferred_element_type=jnp.float32)
        acc = acc + jnp.dot(shift_next(y), w_next, preferred_element_type=jnp.float32)
        return leaky(acc + bias(layer, cout))

    # attentionConvNet: 64 -> 16 -> 8 -> 4 -> 2 -> 1 channels, LeakyReLU(0.02).
    y = x
    for layer in range(5):
        y = conv(y, layer)                                # ends as (L, 1)

    # attentionNet: Linear(L -> L) + softmax.
    # slab holds WL transposed: wlt[i, j] = WL[j, i]  =>  logits[j] = sum_i WL[j, i] * y[i].
    wlt = p_ref[WL_OFF:WL_OFF + L, 0:L]                   # (L, L)
    logits = jnp.sum(wlt * y, axis=0, keepdims=True) + bias(5, L)   # (1, L)
    m = jnp.max(logits, axis=1, keepdims=True)
    e = jnp.exp(logits - m)
    att = e / jnp.sum(e, axis=1, keepdims=True)           # (1, L) softmax weights

    # torch.sum(att * x, dim=1): (1, L) @ (L, DIM_AUD) on the MXU, lane-dense output row.
    out_ref[0] = jnp.dot(att, x, preferred_element_type=jnp.float32)


@jax.jit
def audio_att_net(x, packed_params):
    """x: (B, SEQ_LEN, DIM_AUD) f32; returns (B, DIM_AUD).
    Row b equals the PyTorch module's forward on x[b:b+1] (the module is batch-1)."""
    B = x.shape[0]
    x = x.astype(jnp.float32)
    out = pl.pallas_call(
        audio_att_kernel,
        out_shape=jax.ShapeDtypeStruct((B, 1, DIM_AUD), jnp.float32),
        grid_spec=pltpu.PrefetchScalarGridSpec(
            num_scalar_prefetch=0,
            grid=(B,),
            in_specs=[
                pl.BlockSpec((1, SEQ_LEN, DIM_AUD), lambda b: (b, 0, 0)),
                # Weight slab: same (0, 0) block every step -> DMA'd once, VMEM-resident.
                pl.BlockSpec((SLAB_ROWS, SLAB_LANES), lambda b: (0, 0)),
            ],
            out_specs=pl.BlockSpec((1, 1, DIM_AUD), lambda b: (b, 0, 0)),
        ),
        compiler_params=pltpu.CompilerParams(
            dimension_semantics=("parallel",)),
    )(x, packed_params)
    return out.reshape(B, DIM_AUD)


def reference(x, params):
    """Pure-JAX replica of the PyTorch forward (vectorized over independent windows)."""
    y = jnp.transpose(x, (0, 2, 1))                       # (B, C, L)
    for (w, b) in params["convs"]:
        y = jax.lax.conv_general_dilated(
            y, w, window_strides=(1,), padding=((1, 1),),
            dimension_numbers=("NCH", "OIH", "NCH"))
        y = y + b[None, :, None]
        y = jnp.where(y > 0, y, LEAKY_SLOPE * y)
    wl, bl = params["linear"]
    logits = y.reshape(-1, SEQ_LEN) @ wl.T + bl           # (B, L)
    att = jax.nn.softmax(logits, axis=1)[..., None]       # (B, L, 1)
    return jnp.sum(att * x, axis=1)                       # (B, DIM_AUD)


if __name__ == "__main__":
    key = jax.random.PRNGKey(0)
    keys = jax.random.split(key, 16)
    ki = 0

    params = {"convs": [], "linear": None}
    for i in range(5):
        cin, cout = CONV_CHANNELS[i], CONV_CHANNELS[i + 1]
        scale = 1.0 / (cin * 3) ** 0.5
        w = jax.random.uniform(keys[ki], (cout, cin, 3), jnp.float32, -scale, scale); ki += 1
        b = jax.random.uniform(keys[ki], (cout,), jnp.float32, -scale, scale); ki += 1
        params["convs"].append((w, b))
    scale = 1.0 / SEQ_LEN ** 0.5
    wl = jax.random.uniform(keys[ki], (SEQ_LEN, SEQ_LEN), jnp.float32, -scale, scale); ki += 1
    bl = jax.random.uniform(keys[ki], (SEQ_LEN,), jnp.float32, -scale, scale); ki += 1
    params["linear"] = (wl, bl)

    # Host-side packing happens ONCE (model-load time), not per forward call.
    packed = jax.block_until_ready(pack_params(params))

    # Module-faithful single window (batch=1, exactly the PyTorch forward).
    x1 = jax.random.normal(keys[ki], (1, SEQ_LEN, DIM_AUD), jnp.float32); ki += 1
    out1 = jax.block_until_ready(audio_att_net(x1, packed))
    ref1 = reference(x1, params)
    ok1 = out1.shape == (1, DIM_AUD) and bool(jnp.allclose(out1, ref1, atol=2e-5, rtol=2e-5))

    # Batched: many independent windows through ONE pallas_call (slab DMA'd once,
    # launch overhead amortized; parallel axis -> both TCs on v7x).
    B = 6
    xb = jax.random.normal(keys[ki], (B, SEQ_LEN, DIM_AUD), jnp.float32); ki += 1
    outb = jax.block_until_ready(audio_att_net(xb, packed))
    refb = reference(xb, params)
    ok2 = outb.shape == (B, DIM_AUD) and bool(jnp.allclose(outb, refb, atol=2e-5, rtol=2e-5))

    if not (ok1 and ok2):
        raise AssertionError("Pallas output does not match JAX reference")
    print("KERNEL_OK")
</pallas_src>

<mosaic_0001>
module attributes {stable_mosaic.version = 11 : i64} {
  func.func @audio_att_kernel(%arg0: i32, %arg1: memref<1x8x64xf32, #tpu.memory_space<vmem>>, %arg2: memref<296x16xf32, #tpu.memory_space<vmem>>, %arg3: memref<1x1x64xf32, #tpu.memory_space<vmem>>) attributes {dimension_semantics = [#tpu.dimension_semantics<parallel>], iteration_bounds = array<i64: 1>, scalar_prefetch = 0 : i64, scratch_operands = 0 : i64, tpu.core_type = #tpu.core_type<tc>, window_params = [{transform_indices = @transform_0, window_bounds = array<i64: 1, 8, 64>}, {pipeline_mode = #tpu.pipeline_mode<synchronous>, transform_indices = @transform_1, window_bounds = array<i64: 296, 16>}, {transform_indices = @transform_2, window_bounds = array<i64: 1, 1, 64>}]} {
    %c0 = arith.constant 0 : index
    %c0_0 = arith.constant 0 : index
    %c0_1 = arith.constant 0 : index
    %0 = vector.load %arg1[%c0, %c0_0, %c0_1] : memref<1x8x64xf32, #tpu.memory_space<vmem>>, vector<1x8x64xf32>
    %1 = vector.shape_cast %0 : vector<1x8x64xf32> to vector<8x64xf32>
    %2 = tpu.iota {dimensions = array<i32: 0>} : vector<8x1xi32>
    %c0_i32 = arith.constant 0 : i32
    %3 = vector.broadcast %c0_i32 : i32 to vector<8x1xi32>
    %4 = arith.cmpi eq, %2, %3 : vector<8x1xi32>
    %c7_i32 = arith.constant 7 : i32
    %5 = vector.broadcast %c7_i32 : i32 to vector<8x1xi32>
    %6 = arith.cmpi eq, %2, %5 : vector<8x1xi32>
    %c0_2 = arith.constant 0 : index
    %c0_3 = arith.constant 0 : index
    %7 = vector.load %arg2[%c0_2, %c0_3] : memref<296x16xf32, #tpu.memory_space<vmem>>, vector<64x16xf32>
    %c64 = arith.constant 64 : index
    %c0_4 = arith.constant 0 : index
    %8 = vector.load %arg2[%c64, %c0_4] : memref<296x16xf32, #tpu.memory_space<vmem>>, vector<64x16xf32>
    %c128 = arith.constant 128 : index
    %c0_5 = arith.constant 0 : index
    %9 = vector.load %arg2[%c128, %c0_5] : memref<296x16xf32, #tpu.memory_space<vmem>>, vector<64x16xf32>
    %c1_i32 = arith.constant 1 : i32
    %10 = tpu.dynamic_rotate %1 by %c1_i32 dim 0 : vector<8x64xf32>, i32 -> vector<8x64xf32>
    %cst = arith.constant 0.000000e+00 : f32
    %11 = vector.shape_cast %4 : vector<8x1xi1> to vector<8x1xi1>
    %12 = vector.broadcast %11 : vector<8x1xi1> to vector<8x64xi1>
    %13 = vector.broadcast %cst : f32 to vector<8x64xf32>
    %14 = arith.select %12, %13, %10 : vector<8x64xi1>, vector<8x64xf32>
    %cst_6 = arith.constant dense<0.000000e+00> : vector<8x16xf32>
    %15 = tpu.matmul %14, %7, %cst_6 {dimension_numbers = #tpu.dot_dimension_numbers<[1], [0], [0], [1], [0, 0, 1, 1], [], []>} : vector<8x64xf32>, vector<64x16xf32>, vector<8x16xf32> -> vector<8x16xf32>
    %cst_7 = arith.constant dense<0.000000e+00> : vector<8x16xf32>
    %16 = tpu.matmul %1, %8, %cst_7 {dimension_numbers = #tpu.dot_dimension_numbers<[1], [0], [0], [1], [0, 0, 1, 1], [], []>} : vector<8x64xf32>, vector<64x16xf32>, vector<8x16xf32> -> vector<8x16xf32>
    %17 = arith.addf %15, %16 : vector<8x16xf32>
    %c7_i32_8 = arith.constant 7 : i32
    %18 = tpu.dynamic_rotate %1 by %c7_i32_8 dim 0 : vector<8x64xf32>, i32 -> vector<8x64xf32>
    %cst_9 = arith.constant 0.000000e+00 : f32
    %19 = vector.shape_cast %6 : vector<8x1xi1> to vector<8x1xi1>
    %20 = vector.broadcast %19 : vector<8x1xi1> to vector<8x64xi1>
    %21 = vector.broadcast %cst_9 : f32 to vector<8x64xf32>
    %22 = arith.select %20, %21, %18 : vector<8x64xi1>, vector<8x64xf32>
    %cst_10 = arith.constant dense<0.000000e+00> : vector<8x16xf32>
    %23 = tpu.matmul %22, %9, %cst_10 {dimension_numbers = #tpu.dot_dimension_numbers<[1], [0], [0], [1], [0, 0, 1, 1], [], []>} : vector<8x64xf32>, vector<64x16xf32>, vector<8x16xf32> -> vector<8x16xf32>
    %24 = arith.addf %17, %23 : vector<8x16xf32>
    %c290 = arith.constant 290 : index
    %c0_11 = arith.constant 0 : index
    %25 = vector.load %arg2[%c290, %c0_11] : memref<296x16xf32, #tpu.memory_space<vmem>>, vector<1x16xf32>
    %26 = vector.broadcast %25 : vector<1x16xf32> to vector<8x16xf32>
    %27 = arith.addf %24, %26 : vector<8x16xf32>
    %cst_12 = arith.constant 0.000000e+00 : f32
    %28 = vector.broadcast %cst_12 : f32 to vector<8x16xf32>
    %29 = arith.cmpf ogt, %27, %28 : vector<8x16xf32>
    %cst_13 = arith.constant 2.000000e-02 : f32
    %30 = vector.broadcast %cst_13 : f32 to vector<8x16xf32>
    %31 = arith.mulf %30, %27 : vector<8x16xf32>
    %32 = arith.select %29, %27, %31 : vector<8x16xi1>, vector<8x16xf32>
    %c192 = arith.constant 192 : index
    %c0_14 = arith.constant 0 : index
    %33 = vector.load %arg2[%c192, %c0_14] : memref<296x16xf32, #tpu.memory_space<vmem>>, vector<16x8xf32>
    %c208 = arith.constant 208 : index
    %c0_15 = arith.constant 0 : index
    %34 = vector.load %arg2[%c208, %c0_15] : memref<296x16xf32, #tpu.memory_space<vmem>>, vector<16x8xf32>
    %c224 = arith.constant 224 : index
    %c0_16 = arith.constant 0 : index
    %35 = vector.load %arg2[%c224, %c0_16] : memref<296x16xf32, #tpu.memory_space<vmem>>, vector<16x8xf32>
    %c1_i32_17 = arith.constant 1 : i32
    %36 = tpu.dynamic_rotate %32 by %c1_i32_17 dim 0 : vector<8x16xf32>, i32 -> vector<8x16xf32>
    %cst_18 = arith.constant 0.000000e+00 : f32
    %37 = vector.shape_cast %4 : vector<8x1xi1> to vector<8x1xi1>
    %38 = vector.broadcast %37 : vector<8x1xi1> to vector<8x16xi1>
    %39 = vector.broadcast %cst_18 : f32 to vector<8x16xf32>
    %40 = arith.select %38, %39, %36 : vector<8x16xi1>, vector<8x16xf32>
    %cst_19 = arith.constant dense<0.000000e+00> : vector<8x8xf32>
    %41 = tpu.matmul %40, %33, %cst_19 {dimension_numbers = #tpu.dot_dimension_numbers<[1], [0], [0], [1], [0, 0, 1, 1], [], []>} : vector<8x16xf32>, vector<16x8xf32>, vector<8x8xf32> -> vector<8x8xf32>
    %cst_20 = arith.constant dense<0.000000e+00> : vector<8x8xf32>
    %42 = tpu.matmul %32, %34, %cst_20 {dimension_numbers = #tpu.dot_dimension_numbers<[1], [0], [0], [1], [0, 0, 1, 1], [], []>} : vector<8x16xf32>, vector<16x8xf32>, vector<8x8xf32> -> vector<8x8xf32>
    %43 = arith.addf %41, %42 : vector<8x8xf32>
    %c7_i32_21 = arith.constant 7 : i32
    %44 = tpu.dynamic_rotate %32 by %c7_i32_21 dim 0 : vector<8x16xf32>, i32 -> vector<8x16xf32>
    %cst_22 = arith.constant 0.000000e+00 : f32
    %45 = vector.shape_cast %6 : vector<8x1xi1> to vector<8x1xi1>
    %46 = vector.broadcast %45 : vector<8x1xi1> to vector<8x16xi1>
    %47 = vector.broadcast %cst_22 : f32 to vector<8x16xf32>
    %48 = arith.select %46, %47, %44 : vector<8x16xi1>, vector<8x16xf32>
    %cst_23 = arith.constant dense<0.000000e+00> : vector<8x8xf32>
    %49 = tpu.matmul %48, %35, %cst_23 {dimension_numbers = #tpu.dot_dimension_numbers<[1], [0], [0], [1], [0, 0, 1, 1], [], []>} : vector<8x16xf32>, vector<16x8xf32>, vector<8x8xf32> -> vector<8x8xf32>
    %50 = arith.addf %43, %49 : vector<8x8xf32>
    %c291 = arith.constant 291 : index
    %c0_24 = arith.constant 0 : index
    %51 = vector.load %arg2[%c291, %c0_24] : memref<296x16xf32, #tpu.memory_space<vmem>>, vector<1x8xf32>
    %52 = vector.broadcast %51 : vector<1x8xf32> to vector<8x8xf32>
    %53 = arith.addf %50, %52 : vector<8x8xf32>
    %cst_25 = arith.constant 0.000000e+00 : f32
    %54 = vector.broadcast %cst_25 : f32 to vector<8x8xf32>
    %55 = arith.cmpf ogt, %53, %54 : vector<8x8xf32>
    %cst_26 = arith.constant 2.000000e-02 : f32
    %56 = vector.broadcast %cst_26 : f32 to vector<8x8xf32>
    %57 = arith.mulf %56, %53 : vector<8x8xf32>
    %58 = arith.select %55, %53, %57 : vector<8x8xi1>, vector<8x8xf32>
    %c240 = arith.constant 240 : index
    %c0_27 = arith.constant 0 : index
    %59 = vector.load %arg2[%c240, %c0_27] : memref<296x16xf32, #tpu.memory_space<vmem>>, vector<8x4xf32>
    %c248 = arith.constant 248 : index
    %c0_28 = arith.constant 0 : index
    %60 = vector.load %arg2[%c248, %c0_28] : memref<296x16xf32, #tpu.memory_space<vmem>>, vector<8x4xf32>
    %c256 = arith.constant 256 : index
    %c0_29 = arith.constant 0 : index
    %61 = vector.load %arg2[%c256, %c0_29] : memref<296x16xf32, #tpu.memory_space<vmem>>, vector<8x4xf32>
    %c1_i32_30 = arith.constant 1 : i32
    %62 = tpu.dynamic_rotate %58 by %c1_i32_30 dim 0 : vector<8x8xf32>, i32 -> vector<8x8xf32>
    %cst_31 = arith.constant 0.000000e+00 : f32
    %63 = vector.shape_cast %4 : vector<8x1xi1> to vector<8x1xi1>
    %64 = vector.broadcast %63 : vector<8x1xi1> to vector<8x8xi1>
    %65 = vector.broadcast %cst_31 : f32 to vector<8x8xf32>
    %66 = arith.select %64, %65, %62 : vector<8x8xi1>, vector<8x8xf32>
    %cst_32 = arith.constant dense<0.000000e+00> : vector<8x4xf32>
    %67 = tpu.matmul %66, %59, %cst_32 {dimension_numbers = #tpu.dot_dimension_numbers<[1], [0], [0], [1], [0, 0, 1, 1], [], []>} : vector<8x8xf32>, vector<8x4xf32>, vector<8x4xf32> -> vector<8x4xf32>
    %cst_33 = arith.constant dense<0.000000e+00> : vector<8x4xf32>
    %68 = tpu.matmul %58, %60, %cst_33 {dimension_numbers = #tpu.dot_dimension_numbers<[1], [0], [0], [1], [0, 0, 1, 1], [], []>} : vector<8x8xf32>, vector<8x4xf32>, vector<8x4xf32> -> vector<8x4xf32>
    %69 = arith.addf %67, %68 : vector<8x4xf32>
    %c7_i32_34 = arith.constant 7 : i32
    %70 = tpu.dynamic_rotate %58 by %c7_i32_34 dim 0 : vector<8x8xf32>, i32 -> vector<8x8xf32>
    %cst_35 = arith.constant 0.000000e+00 : f32
    %71 = vector.shape_cast %6 : vector<8x1xi1> to vector<8x1xi1>
    %72 = vector.broadcast %71 : vector<8x1xi1> to vector<8x8xi1>
    %73 = vector.broadcast %cst_35 : f32 to vector<8x8xf32>
    %74 = arith.select %72, %73, %70 : vector<8x8xi1>, vector<8x8xf32>
    %cst_36 = arith.constant dense<0.000000e+00> : vector<8x4xf32>
    %75 = tpu.matmul %74, %61, %cst_36 {dimension_numbers = #tpu.dot_dimension_numbers<[1], [0], [0], [1], [0, 0, 1, 1], [], []>} : vector<8x8xf32>, vector<8x4xf32>, vector<8x4xf32> -> vector<8x4xf32>
    %76 = arith.addf %69, %75 : vector<8x4xf32>
    %c292 = arith.constant 292 : index
    %c0_37 = arith.constant 0 : index
    %77 = vector.load %arg2[%c292, %c0_37] : memref<296x16xf32, #tpu.memory_space<vmem>>, vector<1x4xf32>
    %78 = vector.broadcast %77 : vector<1x4xf32> to vector<8x4xf32>
    %79 = arith.addf %76, %78 : vector<8x4xf32>
    %cst_38 = arith.constant 0.000000e+00 : f32
    %80 = vector.broadcast %cst_38 : f32 to vector<8x4xf32>
    %81 = arith.cmpf ogt, %79, %80 : vector<8x4xf32>
    %cst_39 = arith.constant 2.000000e-02 : f32
    %82 = vector.broadcast %cst_39 : f32 to vector<8x4xf32>
    %83 = arith.mulf %82, %79 : vector<8x4xf32>
    %84 = arith.select %81, %79, %83 : vector<8x4xi1>, vector<8x4xf32>
    %c264 = arith.constant 264 : index
    %c0_40 = arith.constant 0 : index
    %85 = vector.load %arg2[%c264, %c0_40] : memref<296x16xf32, #tpu.memory_space<vmem>>, vector<4x2xf32>
    %c268 = arith.constant 268 : index
    %c0_41 = arith.constant 0 : index
    %86 = vector.load %arg2[%c268, %c0_41] : memref<296x16xf32, #tpu.memory_space<vmem>>, vector<4x2xf32>
    %c272 = arith.constant 272 : index
    %c0_42 = arith.constant 0 : index
    %87 = vector.load %arg2[%c272, %c0_42] : memref<296x16xf32, #tpu.memory_space<vmem>>, vector<4x2xf32>
    %c1_i32_43 = arith.constant 1 : i32
    %88 = tpu.dynamic_rotate %84 by %c1_i32_43 dim 0 : vector<8x4xf32>, i32 -> vector<8x4xf32>
    %cst_44 = arith.constant 0.000000e+00 : f32
    %89 = vector.shape_cast %4 : vector<8x1xi1> to vector<8x1xi1>
    %90 = vector.broadcast %89 : vector<8x1xi1> to vector<8x4xi1>
    %91 = vector.broadcast %cst_44 : f32 to vector<8x4xf32>
    %92 = arith.select %90, %91, %88 : vector<8x4xi1>, vector<8x4xf32>
    %cst_45 = arith.constant dense<0.000000e+00> : vector<8x2xf32>
    %93 = tpu.matmul %92, %85, %cst_45 {dimension_numbers = #tpu.dot_dimension_numbers<[1], [0], [0], [1], [0, 0, 1, 1], [], []>} : vector<8x4xf32>, vector<4x2xf32>, vector<8x2xf32> -> vector<8x2xf32>
    %cst_46 = arith.constant dense<0.000000e+00> : vector<8x2xf32>
    %94 = tpu.matmul %84, %86, %cst_46 {dimension_numbers = #tpu.dot_dimension_numbers<[1], [0], [0], [1], [0, 0, 1, 1], [], []>} : vector<8x4xf32>, vector<4x2xf32>, vector<8x2xf32> -> vector<8x2xf32>
    %95 = arith.addf %93, %94 : vector<8x2xf32>
    %c7_i32_47 = arith.constant 7 : i32
    %96 = tpu.dynamic_rotate %84 by %c7_i32_47 dim 0 : vector<8x4xf32>, i32 -> vector<8x4xf32>
    %cst_48 = arith.constant 0.000000e+00 : f32
    %97 = vector.shape_cast %6 : vector<8x1xi1> to vector<8x1xi1>
    %98 = vector.broadcast %97 : vector<8x1xi1> to vector<8x4xi1>
    %99 = vector.broadcast %cst_48 : f32 to vector<8x4xf32>
    %100 = arith.select %98, %99, %96 : vector<8x4xi1>, vector<8x4xf32>
    %cst_49 = arith.constant dense<0.000000e+00> : vector<8x2xf32>
    %101 = tpu.matmul %100, %87, %cst_49 {dimension_numbers = #tpu.dot_dimension_numbers<[1], [0], [0], [1], [0, 0, 1, 1], [], []>} : vector<8x4xf32>, vector<4x2xf32>, vector<8x2xf32> -> vector<8x2xf32>
    %102 = arith.addf %95, %101 : vector<8x2xf32>
    %c293 = arith.constant 293 : index
    %c0_50 = arith.constant 0 : index
    %103 = vector.load %arg2[%c293, %c0_50] : memref<296x16xf32, #tpu.memory_space<vmem>>, vector<1x2xf32>
    %104 = vector.broadcast %103 : vector<1x2xf32> to vector<8x2xf32>
    %105 = arith.addf %102, %104 : vector<8x2xf32>
    %cst_51 = arith.constant 0.000000e+00 : f32
    %106 = vector.broadcast %cst_51 : f32 to vector<8x2xf32>
    %107 = arith.cmpf ogt, %105, %106 : vector<8x2xf32>
    %cst_52 = arith.constant 2.000000e-02 : f32
    %108 = vector.broadcast %cst_52 : f32 to vector<8x2xf32>
    %109 = arith.mulf %108, %105 : vector<8x2xf32>
    %110 = arith.select %107, %105, %109 : vector<8x2xi1>, vector<8x2xf32>
    %c276 = arith.constant 276 : index
    %c0_53 = arith.constant 0 : index
    %111 = vector.load %arg2[%c276, %c0_53] : memref<296x16xf32, #tpu.memory_space<vmem>>, vector<2x1xf32>
    %c278 = arith.constant 278 : index
    %c0_54 = arith.constant 0 : index
    %112 = vector.load %arg2[%c278, %c0_54] : memref<296x16xf32, #tpu.memory_space<vmem>>, vector<2x1xf32>
    %c280 = arith.constant 280 : index
    %c0_55 = arith.constant 0 : index
    %113 = vector.load %arg2[%c280, %c0_55] : memref<296x16xf32, #tpu.memory_space<vmem>>, vector<2x1xf32>
    %c1_i32_56 = arith.constant 1 : i32
    %114 = tpu.dynamic_rotate %110 by %c1_i32_56 dim 0 : vector<8x2xf32>, i32 -> vector<8x2xf32>
    %cst_57 = arith.constant 0.000000e+00 : f32
    %115 = vector.shape_cast %4 : vector<8x1xi1> to vector<8x1xi1>
    %116 = vector.broadcast %115 : vector<8x1xi1> to vector<8x2xi1>
    %117 = vector.broadcast %cst_57 : f32 to vector<8x2xf32>
    %118 = arith.select %116, %117, %114 : vector<8x2xi1>, vector<8x2xf32>
    %cst_58 = arith.constant dense<0.000000e+00> : vector<8x1xf32>
    %119 = tpu.matmul %118, %111, %cst_58 {dimension_numbers = #tpu.dot_dimension_numbers<[1], [0], [0], [1], [0, 0, 1, 1], [], []>} : vector<8x2xf32>, vector<2x1xf32>, vector<8x1xf32> -> vector<8x1xf32>
    %cst_59 = arith.constant dense<0.000000e+00> : vector<8x1xf32>
    %120 = tpu.matmul %110, %112, %cst_59 {dimension_numbers = #tpu.dot_dimension_numbers<[1], [0], [0], [1], [0, 0, 1, 1], [], []>} : vector<8x2xf32>, vector<2x1xf32>, vector<8x1xf32> -> vector<8x1xf32>
    %121 = arith.addf %119, %120 : vector<8x1xf32>
    %c7_i32_60 = arith.constant 7 : i32
    %122 = tpu.dynamic_rotate %110 by %c7_i32_60 dim 0 : vector<8x2xf32>, i32 -> vector<8x2xf32>
    %cst_61 = arith.constant 0.000000e+00 : f32
    %123 = vector.shape_cast %6 : vector<8x1xi1> to vector<8x1xi1>
    %124 = vector.broadcast %123 : vector<8x1xi1> to vector<8x2xi1>
    %125 = vector.broadcast %cst_61 : f32 to vector<8x2xf32>
    %126 = arith.select %124, %125, %122 : vector<8x2xi1>, vector<8x2xf32>
    %cst_62 = arith.constant dense<0.000000e+00> : vector<8x1xf32>
    %127 = tpu.matmul %126, %113, %cst_62 {dimension_numbers = #tpu.dot_dimension_numbers<[1], [0], [0], [1], [0, 0, 1, 1], [], []>} : vector<8x2xf32>, vector<2x1xf32>, vector<8x1xf32> -> vector<8x1xf32>
    %128 = arith.addf %121, %127 : vector<8x1xf32>
    %c294 = arith.constant 294 : index
    %c0_63 = arith.constant 0 : index
    %129 = vector.load %arg2[%c294, %c0_63] : memref<296x16xf32, #tpu.memory_space<vmem>>, vector<1x1xf32>
    %130 = vector.broadcast %129 : vector<1x1xf32> to vector<8x1xf32>
    %131 = arith.addf %128, %130 : vector<8x1xf32>
    %cst_64 = arith.constant 0.000000e+00 : f32
    %132 = vector.broadcast %cst_64 : f32 to vector<8x1xf32>
    %133 = arith.cmpf ogt, %131, %132 : vector<8x1xf32>
    %cst_65 = arith.constant 2.000000e-02 : f32
    %134 = vector.broadcast %cst_65 : f32 to vector<8x1xf32>
    %135 = arith.mulf %134, %131 : vector<8x1xf32>
    %136 = arith.select %133, %131, %135 : vector<8x1xi1>, vector<8x1xf32>
    %c282 = arith.constant 282 : index
    %c0_66 = arith.constant 0 : index
    %137 = vector.load %arg2[%c282, %c0_66] : memref<296x16xf32, #tpu.memory_space<vmem>>, vector<8x8xf32>
    %138 = vector.broadcast %136 : vector<8x1xf32> to vector<8x8xf32>
    %139 = arith.mulf %137, %138 : vector<8x8xf32>
    %cst_67 = arith.constant dense<0.000000e+00> : vector<8xf32>
    %140 = vector.multi_reduction <add>, %139, %cst_67 [0] : vector<8x8xf32> to vector<8xf32>
    %141 = vector.shape_cast %140 : vector<8xf32> to vector<1x8xf32>
    %c295 = arith.constant 295 : index
    %c0_68 = arith.constant 0 : index
    %142 = vector.load %arg2[%c295, %c0_68] : memref<296x16xf32, #tpu.memory_space<vmem>>, vector<1x8xf32>
    %143 = arith.addf %141, %142 : vector<1x8xf32>
    %cst_69 = arith.constant dense<0xFF800000> : vector<1xf32>
    %144 = vector.multi_reduction <maximumf>, %143, %cst_69 [1] : vector<1x8xf32> to vector<1xf32>
    %145 = vector.shape_cast %144 : vector<1xf32> to vector<1x1xf32>
    %146 = vector.broadcast %145 : vector<1x1xf32> to vector<1x8xf32>
    %147 = arith.subf %143, %146 : vector<1x8xf32>
    %148 = math.exp %147 : vector<1x8xf32>
    %cst_70 = arith.constant dense<0.000000e+00> : vector<1xf32>
    %149 = vector.multi_reduction <add>, %148, %cst_70 [1] : vector<1x8xf32> to vector<1xf32>
    %150 = vector.shape_cast %149 : vector<1xf32> to vector<1x1xf32>
    %151 = vector.broadcast %150 : vector<1x1xf32> to vector<1x8xf32>
    %152 = arith.divf %148, %151 : vector<1x8xf32>
    %cst_71 = arith.constant dense<0.000000e+00> : vector<1x64xf32>
    %153 = tpu.matmul %152, %1, %cst_71 {dimension_numbers = #tpu.dot_dimension_numbers<[1], [0], [0], [1], [0, 0, 1, 1], [], []>} : vector<1x8xf32>, vector<8x64xf32>, vector<1x64xf32> -> vector<1x64xf32>
    %c0_72 = arith.constant 0 : index
    %c0_73 = arith.constant 0 : index
    %c0_74 = arith.constant 0 : index
    %154 = vector.load %arg3[%c0_72, %c0_73, %c0_74] : memref<1x1x64xf32, #tpu.memory_space<vmem>>, vector<1x1x64xf32>
    %155 = vector.shape_cast %154 : vector<1x1x64xf32> to vector<1x64xf32>
    %156 = vector.shape_cast %153 : vector<1x64xf32> to vector<1x1x64xf32>
    tpu.vector_store %arg3[%c0_72, %c0_73, %c0_74], %156 {strides = array<i32>} : memref<1x1x64xf32, #tpu.memory_space<vmem>>, vector<1x1x64xf32>,
    return
  }
  func.func @transform_0(%arg0: i32) -> (i32, i32, i32) {
    %c0_i32 = arith.constant 0 : i32
    %c0_i32_0 = arith.constant 0 : i32
    %c0_i32_1 = arith.constant 0 : i32
    return %arg0, %c0_i32, %c0_i32_0 : i32, i32, i32
  }
  func.func @transform_1(%arg0: i32) -> (i32, i32) {
    %c0_i32 = arith.constant 0 : i32
    %c0_i32_0 = arith.constant 0 : i32
    %c0_i32_1 = arith.constant 0 : i32
    return %c0_i32, %c0_i32_0 : i32, i32
  }
  func.func @transform_2(%arg0: i32) -> (i32, i32, i32) {
    %c0_i32 = arith.constant 0 : i32
    %c0_i32_0 = arith.constant 0 : i32
    %c0_i32_1 = arith.constant 0 : i32
    return %arg0, %c0_i32, %c0_i32_0 : i32, i32, i32
  }
}

</mosaic_0001>

<llo_original>
// kernel: audio_att_net.1
$region0: #{audio_att_net.1}
  #allocation0 [shape = 'u32[]', space=smem, size = 0x4, offset = 0x4, fixed_abs, tag = 'smem constant byte address 0x4 - core index']
  #allocation1 [shape = 'u32[144,128]{1,0:T(1,128)}', space=vmem, size = 0x12000, scoped, tag = 'internal scratch']
  %s0 = inlined_call_operand.vmem [shape: f32[1,8,64], index: 0, kind: input, shape index: {}]
  %s1 = inlined_call_operand.vmem [shape: f32[296,16], index: 1, kind: input, shape index: {}]
  %s2 = inlined_call_operand.hbm [shape: f32[1,1,64], index: 2, kind: output, shape index: {}]
  %s3 = sld [smem:[#allocation0]]
  $region18: #{audio_att_net.1} parent=0
    _
  %s5 = ssub.s32 1, %s3
  %s6 = scalar_select 0, %s5, %s3
  $region1: #{audio_att_net.1} parent=0
    #allocation2 [shape = 'u8[512]{0}', space=vmem, size = 0x400, scoped, tag = 'output window, operand 0, single buffered']
    #allocation3 [shape = 's32[1]{0}', space=sflag, size = 0x4, scoped, tag = 'scoped memory for audio_att_net.1']
    %7 = vsyncpa [#allocation3], 0
    // Predicated region
    $region2: #{audio_att_net.1} parent=1 // pred_check
      _
    $region3: #{audio_att_net.1} parent=1 // pred_check_branch
      %9 = sbr.rel (0) target = $region5
    $region4: #{audio_att_net.1} parent=1 // pred_region
      _
    $region5: #{audio_att_net.1} parent=1 // pred_fallthru
      _
    // Predicated region
    $region6: #{audio_att_net.1} parent=1 // pred_check
      _
    $region7: #{audio_att_net.1} parent=1 // pred_check_branch
      %11 = sbr.rel (0) target = $region9
    $region8: #{audio_att_net.1} parent=1 // pred_region
      _
    $region9: #{audio_att_net.1} parent=1 // pred_fallthru
      _
    %v12 = vld [vmem:[%s0] sm:$0xff]
    %v13 = vlaneseq
    %v14 = vshrl.u32 %v13, 7
    %vm15 = vcmp.eq.s32.totalorder %v14, 0
    %vm16 = vcmp.eq.s32.totalorder %v14, 7
    %v17 = vld [vmem:[%s1] sm:$0xff]
    %v18 = vld [vmem:[%s1 + $0x8] sm:$0xff]
    %v19 = vld [vmem:[%s1 + $0x10] sm:$0xff]
    %v20 = vld [vmem:[%s1 + $0x18] sm:$0xff]
    %v21 = vld [vmem:[%s1 + $0x20] sm:$0xff]
    %v22 = vld [vmem:[%s1 + $0x28] sm:$0xff]
    %v23 = vld [vmem:[%s1 + $0x30] sm:$0xff]
    %v24 = vld [vmem:[%s1 + $0x38] sm:$0xff]
    %v25 = vld [vmem:[%s1 + $0x40] sm:$0xff]
    %v26 = vld [vmem:[%s1 + $0x48] sm:$0xff]
    %v27 = vld [vmem:[%s1 + $0x50] sm:$0xff]
    %v28 = vld [vmem:[%s1 + $0x58] sm:$0xff]
    %v29 = vld [vmem:[%s1 + $0x60] sm:$0xff]
    %v30 = vld [vmem:[%s1 + $0x68] sm:$0xff]
    %v31 = vld [vmem:[%s1 + $0x70] sm:$0xff]
    %v32 = vld [vmem:[%s1 + $0x78] sm:$0xff]
    %v33 = vld [vmem:[%s1 + $0x80] sm:$0xff]
    %v34 = vld [vmem:[%s1 + $0x88] sm:$0xff]
    %v35 = vld [vmem:[%s1 + $0x90] sm:$0xff]
    %v36 = vld [vmem:[%s1 + $0x98] sm:$0xff]
    %v37 = vld [vmem:[%s1 + $0xa0] sm:$0xff]
    %v38 = vld [vmem:[%s1 + $0xa8] sm:$0xff]
    %v39 = vld [vmem:[%s1 + $0xb0] sm:$0xff]
    %v40 = vld [vmem:[%s1 + $0xb8] sm:$0xff]
    %v41 = vrot.slane %v12, 7
    %v42 = vsel %vm15, 1, 0
    %vm43 = vcmp.eq.s32.totalorder %v42, 1
    %v44 = vsel %vm43, 0.0, %v41
    %vm45 = vcmask 523264
    %v47 = vsel %vm45, %v12, 0
    %49 = vmatprep.subr.mxu0 0.0
    %50 = vmatpush1.msra.mxu0 %v25
    %51 = vmatprep.subr.mxu0 0.0
    %52 = vmatpush1.msra.mxu0 %v26
    %53 = vmatprep.subr.mxu0 0.0
    %54 = vmatpush1.msra.mxu0 %v27
    %55 = vmatprep.subr.mxu0 0.0
    %56 = vmatpush1.msra.mxu0 %v28
    %57 = vmatprep.subr.mxu0 0.0
    %58 = vmatpush1.msra.mxu0 %v29
    %59 = vmatprep.subr.mxu0 0.0
    %60 = vmatpush1.msra.mxu0 %v30
    %61 = vmatprep.subr.mxu0 0.0
    %62 = vmatpush1.msra.mxu0 %v31
    %63 = vmatprep.subr.mxu0 0.0
    %64 = vmatpush1.msra.mxu0 %v32
    %65 = vmatprep.subr.mxu0 0.0
    %66 = vmatpush1.msra.mxu0 0.0
    %67 = vmatprep.subr.mxu0 0.0
    %68 = vmatpush1.msra.mxu0 0.0
    %69 = vmatprep.subr.mxu0 0.0
    %70 = vmatpush1.msra.mxu0 0.0
    %71 = vmatprep.subr.mxu0 0.0
    %72 = vmatpush1.msra.mxu0 0.0
    %73 = vmatprep.subr.mxu0 0.0
    %74 = vmatpush1.msra.mxu0 0.0
    %75 = vmatprep.subr.mxu0 0.0
    %76 = vmatpush1.msra.mxu0 0.0
    %77 = vmatprep.subr.mxu0 0.0
    %78 = vmatpush1.msra.mxu0 0.0
    %79 = vmatprep.subr.mxu0 0.0
    %80 = vmatpush1.msra.mxu0 0.0
    %81 = vmatprep.subr.mxu0 0.0
    %82 = vmatpush1.msra.mxu0 0.0
    %83 = vmatprep.subr.mxu0 0.0
    %84 = vmatpush1.msra.mxu0 0.0
    %85 = vmatprep.subr.mxu0 0.0
    %86 = vmatpush1.msra.mxu0 0.0
    %87 = vmatprep.subr.mxu0 0.0
    %88 = vmatpush1.msra.mxu0 0.0
    %89 = vmatprep.subr.mxu0 0.0
    %90 = vmatpush1.msra.mxu0 0.0
    %91 = vmatprep.subr.mxu0 0.0
    %92 = vmatpush1.msra.mxu0 0.0
    %93 = vmatprep.subr.mxu0 0.0
    %94 = vmatpush1.msra.mxu0 0.0
    %95 = vmatprep.subr.mxu0 0.0
    %96 = vmatpush1.msra.mxu0 0.0
    %97 = vmatprep.subr.mxu0 0.0
    %98 = vmatpush1.msra.mxu0 0.0
    %99 = vmatprep.subr.mxu0 0.0
    %100 = vmatpush1.msra.mxu0 0.0
    %101 = vmatprep.subr.mxu0 0.0
    %102 = vmatpush1.msra.mxu0 0.0
    %103 = vmatprep.subr.mxu0 0.0
    %104 = vmatpush1.msra.mxu0 0.0
    %105 = vmatprep.subr.mxu0 0.0
    %106 = vmatpush1.msra.mxu0 0.0
    %107 = vmatprep.subr.mxu0 0.0
    %108 = vmatpush1.msra.mxu0 0.0
    %109 = vmatprep.subr.mxu0 0.0
    %110 = vmatpush1.msra.mxu0 0.0
    %111 = vmatprep.subr.mxu0 0.0
    %112 = vmatpush1.msra.mxu0 0.0
    %113 = vmatprep.mubr.f32.mxu0 0.0
    %114 = vmatmul.mubr.f32.gmra.mrb[0].mxu0 %v47
    %v115 = vpop.f32.mrb[0].mxu0
    %v116 = vadd.f32 0.0, %v115
    %v117 = vpop.f32.mrb[0].mxu0
    %118 = vdwg.mxu0
    %v120 = vsel %vm45, %v44, 0
    %122 = vmatprep.subr.mxu0 0.0
    %123 = vmatpush1.msra.mxu0 %v17
    %124 = vmatprep.subr.mxu0 0.0
    %125 = vmatpush1.msra.mxu0 %v18
    %126 = vmatprep.subr.mxu0 0.0
    %127 = vmatpush1.msra.mxu0 %v19
    %128 = vmatprep.subr.mxu0 0.0
    %129 = vmatpush1.msra.mxu0 %v20
    %130 = vmatprep.subr.mxu0 0.0
    %131 = vmatpush1.msra.mxu0 %v21
    %132 = vmatprep.subr.mxu0 0.0
    %133 = vmatpush1.msra.mxu0 %v22
    %134 = vmatprep.subr.mxu0 0.0
    %135 = vmatpush1.msra.mxu0 %v23
    %136 = vmatprep.subr.mxu0 0.0
    %137 = vmatpush1.msra.mxu0 %v24
    %138 = vmatprep.subr.mxu0 0.0
    %139 = vmatpush1.msra.mxu0 0.0
    %140 = vmatprep.subr.mxu0 0.0
    %141 = vmatpush1.msra.mxu0 0.0
    %142 = vmatprep.subr.mxu0 0.0
    %143 = vmatpush1.msra.mxu0 0.0
    %144 = vmatprep.subr.mxu0 0.0
    %145 = vmatpush1.msra.mxu0 0.0
    %146 = vmatprep.subr.mxu0 0.0
    %147 = vmatpush1.msra.mxu0 0.0
    %148 = vmatprep.subr.mxu0 0.0
    %149 = vmatpush1.msra.mxu0 0.0
    %150 = vmatprep.subr.mxu0 0.0
    %151 = vmatpush1.msra.mxu0 0.0
    %152 = vmatprep.subr.mxu0 0.0
    %153 = vmatpush1.msra.mxu0 0.0
    %154 = vmatprep.subr.mxu0 0.0
    %155 = vmatpush1.msra.mxu0 0.0
    %156 = vmatprep.subr.mxu0 0.0
    %157 = vmatpush1.msra.mxu0 0.0
    %158 = vmatprep.subr.mxu0 0.0
    %159 = vmatpush1.msra.mxu0 0.0
    %160 = vmatprep.subr.mxu0 0.0
    %161 = vmatpush1.msra.mxu0 0.0
    %162 = vmatprep.subr.mxu0 0.0
    %163 = vmatpush1.msra.mxu0 0.0
    %164 = vmatprep.subr.mxu0 0.0
    %165 = vmatpush1.msra.mxu0 0.0
    %166 = vmatprep.subr.mxu0 0.0
    %167 = vmatpush1.msra.mxu0 0.0
    %168 = vmatprep.subr.mxu0 0.0
    %169 = vmatpush1.msra.mxu0 0.0
    %170 = vmatprep.subr.mxu0 0.0
    %171 = vmatpush1.msra.mxu0 0.0
    %172 = vmatprep.subr.mxu0 0.0
    %173 = vmatpush1.msra.mxu0 0.0
    %174 = vmatprep.subr.mxu0 0.0
    %175 = vmatpush1.msra.mxu0 0.0
    %176 = vmatprep.subr.mxu0 0.0
    %177 = vmatpush1.msra.mxu0 0.0
    %178 = vmatprep.subr.mxu0 0.0
    %179 = vmatpush1.msra.mxu0 0.0
    %180 = vmatprep.subr.mxu0 0.0
    %181 = vmatpush1.msra.mxu0 0.0
    %182 = vmatprep.subr.mxu0 0.0
    %183 = vmatpush1.msra.mxu0 0.0
    %184 = vmatprep.subr.mxu0 0.0
    %185 = vmatpush1.msra.mxu0 0.0
    %186 = vmatprep.mubr.f32.mxu0 0.0
    %187 = vmatmul.mubr.f32.gmra.mrb[0].mxu0 %v120
    %v188 = vpop.f32.mrb[0].mxu0
    %v189 = vadd.f32 %v116, %v188
    %v190 = vpop.f32.mrb[0].mxu0
    %191 = vdwg.mxu0
    %v192 = vrot.slane %v12, 1
    %v193 = vsel %vm16, 1, 0
    %vm194 = vcmp.eq.s32.totalorder %v193, 1
    %v195 = vsel %vm194, 0.0, %v192
    %v197 = vsel %vm45, %v195, 0
    %199 = vmatprep.subr.mxu0 0.0
    %200 = vmatpush1.msra.mxu0 %v33
    %201 = vmatprep.subr.mxu0 0.0
    %202 = vmatpush1.msra.mxu0 %v34
    %203 = vmatprep.subr.mxu0 0.0
    %204 = vmatpush1.msra.mxu0 %v35
    %205 = vmatprep.subr.mxu0 0.0
    %206 = vmatpush1.msra.mxu0 %v36
    %207 = vmatprep.subr.mxu0 0.0
    %208 = vmatpush1.msra.mxu0 %v37
    %209 = vmatprep.subr.mxu0 0.0
    %210 = vmatpush1.msra.mxu0 %v38
    %211 = vmatprep.subr.mxu0 0.0
    %212 = vmatpush1.msra.mxu0 %v39
    %213 = vmatprep.subr.mxu0 0.0
    %214 = vmatpush1.msra.mxu0 %v40
    %215 = vmatprep.subr.mxu0 0.0
    %216 = vmatpush1.msra.mxu0 0.0
    %217 = vmatprep.subr.mxu0 0.0
    %218 = vmatpush1.msra.mxu0 0.0
    %219 = vmatprep.subr.mxu0 0.0
    %220 = vmatpush1.msra.mxu0 0.0
    %221 = vmatprep.subr.mxu0 0.0
    %222 = vmatpush1.msra.mxu0 0.0
    %223 = vmatprep.subr.mxu0 0.0
    %224 = vmatpush1.msra.mxu0 0.0
    %225 = vmatprep.subr.mxu0 0.0
    %226 = vmatpush1.msra.mxu0 0.0
    %227 = vmatprep.subr.mxu0 0.0
    %228 = vmatpush1.msra.mxu0 0.0
    %229 = vmatprep.subr.mxu0 0.0
    %230 = vmatpush1.msra.mxu0 0.0
    %231 = vmatprep.subr.mxu0 0.0
    %232 = vmatpush1.msra.mxu0 0.0
    %233 = vmatprep.subr.mxu0 0.0
    %234 = vmatpush1.msra.mxu0 0.0
    %235 = vmatprep.subr.mxu0 0.0
    %236 = vmatpush1.msra.mxu0 0.0
    %237 = vmatprep.subr.mxu0 0.0
    %238 = vmatpush1.msra.mxu0 0.0
    %239 = vmatprep.subr.mxu0 0.0
    %240 = vmatpush1.msra.mxu0 0.0
    %241 = vmatprep.subr.mxu0 0.0
    %242 = vmatpush1.msra.mxu0 0.0
    %243 = vmatprep.subr.mxu0 0.0
    %244 = vmatpush1.msra.mxu0 0.0
    %245 = vmatprep.subr.mxu0 0.0
    %246 = vmatpush1.msra.mxu0 0.0
    %247 = vmatprep.subr.mxu0 0.0
    %248 = vmatpush1.msra.mxu0 0.0
    %249 = vmatprep.subr.mxu0 0.0
    %250 = vmatpush1.msra.mxu0 0.0
    %251 = vmatprep.subr.mxu0 0.0
    %252 = vmatpush1.msra.mxu0 0.0
    %253 = vmatprep.subr.mxu0 0.0
    %254 = vmatpush1.msra.mxu0 0.0
    %255 = vmatprep.subr.mxu0 0.0
    %256 = vmatpush1.msra.mxu0 0.0
    %257 = vmatprep.subr.mxu0 0.0
    %258 = vmatpush1.msra.mxu0 0.0
    %259 = vmatprep.subr.mxu0 0.0
    %260 = vmatpush1.msra.mxu0 0.0
    %261 = vmatprep.subr.mxu0 0.0
    %262 = vmatpush1.msra.mxu0 0.0
    %263 = vmatprep.mubr.f32.mxu0 0.0
    %264 = vmatmul.mubr.f32.gmra.mrb[0].mxu0 %v197
    %v265 = vpop.f32.mrb[0].mxu0
    %v266 = vadd.f32 0.0, %v265
    %v267 = vpop.f32.mrb[0].mxu0
    %268 = vdwg.mxu0
    %v269 = vadd.f32 %v189, %v266
    %v270 = vld [vmem:[%s1 + $0x122] sm:$0x1]
    %v271 = vlaneseq
    %v272 = vshrl.u32 %v271, 7
    %v273 = vsub.s32 0, %v272
    %v274 = vrot.slane %v270, %v273
    %v275 = vadd.f32 %v269, %v274
    %vm276 = vcmp.gt.f32.partialorder %v275, 0.0
    %v277 = vmul.f32 %v275, 0.02
    %v278 = vsel %vm276, %v275, %v277
    %v279 = vld [vmem:[%s1 + $0xc0] sm:$0xff]
    %v280 = vld [vmem:[%s1 + $0xc8] sm:$0xff]
    %v281 = vld [vmem:[%s1 + $0xd0] sm:$0xff]
    %v282 = vld [vmem:[%s1 + $0xd8] sm:$0xff]
    %v283 = vld [vmem:[%s1 + $0xe0] sm:$0xff]
    %v284 = vld [vmem:[%s1 + $0xe8] sm:$0xff]
    %v285 = vrot.slane %v278, 7
    %v286 = vsel %vm43, 0.0, %v285
    %vm287 = vcmask 130048
    %v289 = vsel %vm287, %v278, 0
    %291 = vmatprep.subr.mxu0 0.0
    %292 = vmatpush1.msra.mxu0 %v281
    %293 = vmatprep.subr.mxu0 0.0
    %294 = vmatpush1.msra.mxu0 %v282
    %295 = vmatprep.subr.mxu0 0.0
    %296 = vmatpush1.msra.mxu0 0.0
    %297 = vmatprep.subr.mxu0 0.0
    %298 = vmatpush1.msra.mxu0 0.0
    %299 = vmatprep.subr.mxu0 0.0
    %300 = vmatpush1.msra.mxu0 0.0
    %301 = vmatprep.subr.mxu0 0.0
    %302 = vmatpush1.msra.mxu0 0.0
    %303 = vmatprep.subr.mxu0 0.0
    %304 = vmatpush1.msra.mxu0 0.0
    %305 = vmatprep.subr.mxu0 0.0
    %306 = vmatpush1.msra.mxu0 0.0
    %307 = vmatprep.subr.mxu0 0.0
    %308 = vmatpush1.msra.mxu0 0.0
    %309 = vmatprep.subr.mxu0 0.0
    %310 = vmatpush1.msra.mxu0 0.0
    %311 = vmatprep.subr.mxu0 0.0
    %312 = vmatpush1.msra.mxu0 0.0
    %313 = vmatprep.subr.mxu0 0.0
    %314 = vmatpush1.msra.mxu0 0.0
    %315 = vmatprep.subr.mxu0 0.0
    %316 = vmatpush1.msra.mxu0 0.0
    %317 = vmatprep.subr.mxu0 0.0
    %318 = vmatpush1.msra.mxu0 0.0
    %319 = vmatprep.subr.mxu0 0.0
    %320 = vmatpush1.msra.mxu0 0.0
    %321 = vmatprep.subr.mxu0 0.0
    %322 = vmatpush1.msra.mxu0 0.0
    %323 = vmatprep.subr.mxu0 0.0
    %324 = vmatpush1.msra.mxu0 0.0
    %325 = vmatprep.subr.mxu0 0.0
    %326 = vmatpush1.msra.mxu0 0.0
    %327 = vmatprep.subr.mxu0 0.0
    %328 = vmatpush1.msra.mxu0 0.0
    %329 = vmatprep.subr.mxu0 0.0
    %330 = vmatpush1.msra.mxu0 0.0
    %331 = vmatprep.subr.mxu0 0.0
    %332 = vmatpush1.msra.mxu0 0.0
    %333 = vmatprep.subr.mxu0 0.0
    %334 = vmatpush1.msra.mxu0 0.0
    %335 = vmatprep.subr.mxu0 0.0
    %336 = vmatpush1.msra.mxu0 0.0
    %337 = vmatprep.subr.mxu0 0.0
    %338 = vmatpush1.msra.mxu0 0.0
    %339 = vmatprep.subr.mxu0 0.0
    %340 = vmatpush1.msra.mxu0 0.0
    %341 = vmatprep.subr.mxu0 0.0
    %342 = vmatpush1.msra.mxu0 0.0
    %343 = vmatprep.subr.mxu0 0.0
    %344 = vmatpush1.msra.mxu0 0.0
    %345 = vmatprep.subr.mxu0 0.0
    %346 = vmatpush1.msra.mxu0 0.0
    %347 = vmatprep.subr.mxu0 0.0
    %348 = vmatpush1.msra.mxu0 0.0
    %349 = vmatprep.subr.mxu0 0.0
    %350 = vmatpush1.msra.mxu0 0.0
    %351 = vmatprep.subr.mxu0 0.0
    %352 = vmatpush1.msra.mxu0 0.0
    %353 = vmatprep.subr.mxu0 0.0
    %354 = vmatpush1.msra.mxu0 0.0
    %355 = vmatprep.mubr.f32.mxu0 0.0
    %356 = vmatmul.mubr.f32.gmra.mrb[0].mxu0 %v289
    %v357 = vpop.f32.mrb[0].mxu0
    %v358 = vadd.f32 0.0, %v357
    %v359 = vpop.f32.mrb[0].mxu0
    %360 = vdwg.mxu0
    %v362 = vsel %vm287, %v286, 0
    %364 = vmatprep.subr.mxu0 0.0
    %365 = vmatpush1.msra.mxu0 %v279
    %366 = vmatprep.subr.mxu0 0.0
    %367 = vmatpush1.msra.mxu0 %v280
    %368 = vmatprep.subr.mxu0 0.0
    %369 = vmatpush1.msra.mxu0 0.0
    %370 = vmatprep.subr.mxu0 0.0
    %371 = vmatpush1.msra.mxu0 0.0
    %372 = vmatprep.subr.mxu0 0.0
    %373 = vmatpush1.msra.mxu0 0.0
    %374 = vmatprep.subr.mxu0 0.0
    %375 = vmatpush1.msra.mxu0 0.0
    %376 = vmatprep.subr.mxu0 0.0
    %377 = vmatpush1.msra.mxu0 0.0
    %378 = vmatprep.subr.mxu0 0.0
    %379 = vmatpush1.msra.mxu0 0.0
    %380 = vmatprep.subr.mxu0 0.0
    %381 = vmatpush1.msra.mxu0 0.0
    %382 = vmatprep.subr.mxu0 0.0
    %383 = vmatpush1.msra.mxu0 0.0
    %384 = vmatprep.subr.mxu0 0.0
    %385 = vmatpush1.msra.mxu0 0.0
    %386 = vmatprep.subr.mxu0 0.0
    %387 = vmatpush1.msra.mxu0 0.0
    %388 = vmatprep.subr.mxu0 0.0
    %389 = vmatpush1.msra.mxu0 0.0
    %390 = vmatprep.subr.mxu0 0.0
    %391 = vmatpush1.msra.mxu0 0.0
    %392 = vmatprep.subr.mxu0 0.0
    %393 = vmatpush1.msra.mxu0 0.0
    %394 = vmatprep.subr.mxu0 0.0
    %395 = vmatpush1.msra.mxu0 0.0
    %396 = vmatprep.subr.mxu0 0.0
    %397 = vmatpush1.msra.mxu0 0.0
    %398 = vmatprep.subr.mxu0 0.0
    %399 = vmatpush1.msra.mxu0 0.0
    %400 = vmatprep.subr.mxu0 0.0
    %401 = vmatpush1.msra.mxu0 0.0
    %402 = vmatprep.subr.mxu0 0.0
    %403 = vmatpush1.msra.mxu0 0.0
    %404 = vmatprep.subr.mxu0 0.0
    %405 = vmatpush1.msra.mxu0 0.0
    %406 = vmatprep.subr.mxu0 0.0
    %407 = vmatpush1.msra.mxu0 0.0
    %408 = vmatprep.subr.mxu0 0.0
    %409 = vmatpush1.msra.mxu0 0.0
    %410 = vmatprep.subr.mxu0 0.0
    %411 = vmatpush1.msra.mxu0 0.0
    %412 = vmatprep.subr.mxu0 0.0
    %413 = vmatpush1.msra.mxu0 0.0
    %414 = vmatprep.subr.mxu0 0.0
    %415 = vmatpush1.msra.mxu0 0.0
    %416 = vmatprep.subr.mxu0 0.0
    %417 = vmatpush1.msra.mxu0 0.0
    %418 = vmatprep.subr.mxu0 0.0
    %419 = vmatpush1.msra.mxu0 0.0
    %420 = vmatprep.subr.mxu0 0.0
    %421 = vmatpush1.msra.mxu0 0.0
    %422 = vmatprep.subr.mxu0 0.0
    %423 = vmatpush1.msra.mxu0 0.0
    %424 = vmatprep.subr.mxu0 0.0
    %425 = vmatpush1.msra.mxu0 0.0
    %426 = vmatprep.subr.mxu0 0.0
    %427 = vmatpush1.msra.mxu0 0.0
    %428 = vmatprep.mubr.f32.mxu0 0.0
    %429 = vmatmul.mubr.f32.gmra.mrb[0].mxu0 %v362
    %v430 = vpop.f32.mrb[0].mxu0
    %v431 = vadd.f32 %v358, %v430
    %v432 = vpop.f32.mrb[0].mxu0
    %433 = vdwg.mxu0
    %v434 = vrot.slane %v278, 1
    %v435 = vsel %vm194, 0.0, %v434
    %v437 = vsel %vm287, %v435, 0
    %439 = vmatprep.subr.mxu0 0.0
    %440 = vmatpush1.msra.mxu0 %v283
    %441 = vmatprep.subr.mxu0 0.0
    %442 = vmatpush1.msra.mxu0 %v284
    %443 = vmatprep.subr.mxu0 0.0
    %444 = vmatpush1.msra.mxu0 0.0
    %445 = vmatprep.subr.mxu0 0.0
    %446 = vmatpush1.msra.mxu0 0.0
    %447 = vmatprep.subr.mxu0 0.0
    %448 = vmatpush1.msra.mxu0 0.0
    %449 = vmatprep.subr.mxu0 0.0
    %450 = vmatpush1.msra.mxu0 0.0
    %451 = vmatprep.subr.mxu0 0.0
    %452 = vmatpush1.msra.mxu0 0.0
    %453 = vmatprep.subr.mxu0 0.0
    %454 = vmatpush1.msra.mxu0 0.0
    %455 = vmatprep.subr.mxu0 0.0
    %456 = vmatpush1.msra.mxu0 0.0
    %457 = vmatprep.subr.mxu0 0.0
    %458 = vmatpush1.msra.mxu0 0.0
    %459 = vmatprep.subr.mxu0 0.0
    %460 = vmatpush1.msra.mxu0 0.0
    %461 = vmatprep.subr.mxu0 0.0
    %462 = vmatpush1.msra.mxu0 0.0
    %463 = vmatprep.subr.mxu0 0.0
    %464 = vmatpush1.msra.mxu0 0.0
    %465 = vmatprep.subr.mxu0 0.0
    %466 = vmatpush1.msra.mxu0 0.0
    %467 = vmatprep.subr.mxu0 0.0
    %468 = vmatpush1.msra.mxu0 0.0
    %469 = vmatprep.subr.mxu0 0.0
    %470 = vmatpush1.msra.mxu0 0.0
    %471 = vmatprep.subr.mxu0 0.0
    %472 = vmatpush1.msra.mxu0 0.0
    %473 = vmatprep.subr.mxu0 0.0
    %474 = vmatpush1.msra.mxu0 0.0
    %475 = vmatprep.subr.mxu0 0.0
    %476 = vmatpush1.msra.mxu0 0.0
    %477 = vmatprep.subr.mxu0 0.0
    %478 = vmatpush1.msra.mxu0 0.0
    %479 = vmatprep.subr.mxu0 0.0
    %480 = vmatpush1.msra.mxu0 0.0
    %481 = vmatprep.subr.mxu0 0.0
    %482 = vmatpush1.msra.mxu0 0.0
    %483 = vmatprep.subr.mxu0 0.0
    %484 = vmatpush1.msra.mxu0 0.0
    %485 = vmatprep.subr.mxu0 0.0
    %486 = vmatpush1.msra.mxu0 0.0
    %487 = vmatprep.subr.mxu0 0.0
    %488 = vmatpush1.msra.mxu0 0.0
    %489 = vmatprep.subr.mxu0 0.0
    %490 = vmatpush1.msra.mxu0 0.0
    %491 = vmatprep.subr.mxu0 0.0
    %492 = vmatpush1.msra.mxu0 0.0
    %493 = vmatprep.subr.mxu0 0.0
    %494 = vmatpush1.msra.mxu0 0.0
    %495 = vmatprep.subr.mxu0 0.0
    %496 = vmatpush1.msra.mxu0 0.0
    %497 = vmatprep.subr.mxu0 0.0
    %498 = vmatpush1.msra.mxu0 0.0
    %499 = vmatprep.subr.mxu0 0.0
    %500 = vmatpush1.msra.mxu0 0.0
    %501 = vmatprep.subr.mxu0 0.0
    %502 = vmatpush1.msra.mxu0 0.0
    %503 = vmatprep.mubr.f32.mxu0 0.0
    %504 = vmatmul.mubr.f32.gmra.mrb[0].mxu0 %v437
    %v505 = vpop.f32.mrb[0].mxu0
    %v506 = vadd.f32 0.0, %v505
    %v507 = vpop.f32.mrb[0].mxu0
    %508 = vdwg.mxu0
    %v509 = vadd.f32 %v431, %v506
    %v510 = vld [vmem:[%s1 + $0x123] sm:$0x1]
    %v511 = vlaneseq
    %v512 = vshrl.u32 %v511, 7
    %v513 = vsub.s32 0, %v512
    %v514 = vrot.slane %v510, %v513
    %v515 = vadd.f32 %v509, %v514
    %vm516 = vcmp.gt.f32.partialorder %v515, 0.0
    %v517 = vmul.f32 %v515, 0.02
    %v518 = vsel %vm516, %v515, %v517
    %v519 = vld [vmem:[%s1 + $0xf0] sm:$0xff]
    %v520 = vld [vmem:[%s1 + $0xf8] sm:$0xff]
    %v521 = vld [vmem:[%s1 + $0x100] sm:$0xff]
    %v522 = vrot.slane %v518, 7
    %v523 = vsel %vm43, 0.0, %v522
    %vm524 = vcmask 64512
    %v526 = vsel %vm524, %v518, 0
    %528 = vmatprep.subr.mxu0 0.0
    %529 = vmatpush1.msra.mxu0 %v520
    %530 = vmatprep.subr.mxu0 0.0
    %531 = vmatpush1.msra.mxu0 0.0
    %532 = vmatprep.subr.mxu0 0.0
    %533 = vmatpush1.msra.mxu0 0.0
    %534 = vmatprep.subr.mxu0 0.0
    %535 = vmatpush1.msra.mxu0 0.0
    %536 = vmatprep.subr.mxu0 0.0
    %537 = vmatpush1.msra.mxu0 0.0
    %538 = vmatprep.subr.mxu0 0.0
    %539 = vmatpush1.msra.mxu0 0.0
    %540 = vmatprep.subr.mxu0 0.0
    %541 = vmatpush1.msra.mxu0 0.0
    %542 = vmatprep.subr.mxu0 0.0
    %543 = vmatpush1.msra.mxu0 0.0
    %544 = vmatprep.subr.mxu0 0.0
    %545 = vmatpush1.msra.mxu0 0.0
    %546 = vmatprep.subr.mxu0 0.0
    %547 = vmatpush1.msra.mxu0 0.0
    %548 = vmatprep.subr.mxu0 0.0
    %549 = vmatpush1.msra.mxu0 0.0
    %550 = vmatprep.subr.mxu0 0.0
    %551 = vmatpush1.msra.mxu0 0.0
    %552 = vmatprep.subr.mxu0 0.0
    %553 = vmatpush1.msra.mxu0 0.0
    %554 = vmatprep.subr.mxu0 0.0
    %555 = vmatpush1.msra.mxu0 0.0
    %556 = vmatprep.subr.mxu0 0.0
    %557 = vmatpush1.msra.mxu0 0.0
    %558 = vmatprep.subr.mxu0 0.0
    %559 = vmatpush1.msra.mxu0 0.0
    %560 = vmatprep.subr.mxu0 0.0
    %561 = vmatpush1.msra.mxu0 0.0
    %562 = vmatprep.subr.mxu0 0.0
    %563 = vmatpush1.msra.mxu0 0.0
    %564 = vmatprep.subr.mxu0 0.0
    %565 = vmatpush1.msra.mxu0 0.0
    %566 = vmatprep.subr.mxu0 0.0
    %567 = vmatpush1.msra.mxu0 0.0
    %568 = vmatprep.subr.mxu0 0.0
    %569 = vmatpush1.msra.mxu0 0.0
    %570 = vmatprep.subr.mxu0 0.0
    %571 = vmatpush1.msra.mxu0 0.0
    %572 = vmatprep.subr.mxu0 0.0
    %573 = vmatpush1.msra.mxu0 0.0
    %574 = vmatprep.subr.mxu0 0.0
    %575 = vmatpush1.msra.mxu0 0.0
    %576 = vmatprep.subr.mxu0 0.0
    %577 = vmatpush1.msra.mxu0 0.0
    %578 = vmatprep.subr.mxu0 0.0
    %579 = vmatpush1.msra.mxu0 0.0
    %580 = vmatprep.subr.mxu0 0.0
    %581 = vmatpush1.msra.mxu0 0.0
    %582 = vmatprep.subr.mxu0 0.0
    %583 = vmatpush1.msra.mxu0 0.0
    %584 = vmatprep.subr.mxu0 0.0
    %585 = vmatpush1.msra.mxu0 0.0
    %586 = vmatprep.subr.mxu0 0.0
    %587 = vmatpush1.msra.mxu0 0.0
    %588 = vmatprep.subr.mxu0 0.0
    %589 = vmatpush1.msra.mxu0 0.0
    %590 = vmatprep.subr.mxu0 0.0
    %591 = vmatpush1.msra.mxu0 0.0
    %592 = vmatprep.mubr.f32.mxu0 0.0
    %593 = vmatmul.mubr.f32.gmra.mrb[0].mxu0 %v526
    %v594 = vpop.f32.mrb[0].mxu0
    %v595 = vadd.f32 0.0, %v594
    %v596 = vpop.f32.mrb[0].mxu0
    %597 = vdwg.mxu0
    %v599 = vsel %vm524, %v523, 0
    %601 = vmatprep.subr.mxu0 0.0
    %602 = vmatpush1.msra.mxu0 %v519
    %603 = vmatprep.subr.mxu0 0.0
    %604 = vmatpush1.msra.mxu0 0.0
    %605 = vmatprep.subr.mxu0 0.0
    %606 = vmatpush1.msra.mxu0 0.0
    %607 = vmatprep.subr.mxu0 0.0
    %608 = vmatpush1.msra.mxu0 0.0
    %609 = vmatprep.subr.mxu0 0.0
    %610 = vmatpush1.msra.mxu0 0.0
    %611 = vmatprep.subr.mxu0 0.0
    %612 = vmatpush1.msra.mxu0 0.0
    %613 = vmatprep.subr.mxu0 0.0
    %614 = vmatpush1.msra.mxu0 0.0
    %615 = vmatprep.subr.mxu0 0.0
    %616 = vmatpush1.msra.mxu0 0.0
    %617 = vmatprep.subr.mxu0 0.0
    %618 = vmatpush1.msra.mxu0 0.0
    %619 = vmatprep.subr.mxu0 0.0
    %620 = vmatpush1.msra.mxu0 0.0
    %621 = vmatprep.subr.mxu0 0.0
    %622 = vmatpush1.msra.mxu0 0.0
    %623 = vmatprep.subr.mxu0 0.0
    %624 = vmatpush1.msra.mxu0 0.0
    %625 = vmatprep.subr.mxu0 0.0
    %626 = vmatpush1.msra.mxu0 0.0
    %627 = vmatprep.subr.mxu0 0.0
    %628 = vmatpush1.msra.mxu0 0.0
    %629 = vmatprep.subr.mxu0 0.0
    %630 = vmatpush1.msra.mxu0 0.0
    %631 = vmatprep.subr.mxu0 0.0
    %632 = vmatpush1.msra.mxu0 0.0
    %633 = vmatprep.subr.mxu0 0.0
    %634 = vmatpush1.msra.mxu0 0.0
    %635 = vmatprep.subr.mxu0 0.0
    %636 = vmatpush1.msra.mxu0 0.0
    %637 = vmatprep.subr.mxu0 0.0
    %638 = vmatpush1.msra.mxu0 0.0
    %639 = vmatprep.subr.mxu0 0.0
    %640 = vmatpush1.msra.mxu0 0.0
    %641 = vmatprep.subr.mxu0 0.0
    %642 = vmatpush1.msra.mxu0 0.0
    %643 = vmatprep.subr.mxu0 0.0
    %644 = vmatpush1.msra.mxu0 0.0
    %645 = vmatprep.subr.mxu0 0.0
    %646 = vmatpush1.msra.mxu0 0.0
    %647 = vmatprep.subr.mxu0 0.0
    %648 = vmatpush1.msra.mxu0 0.0
    %649 = vmatprep.subr.mxu0 0.0
    %650 = vmatpush1.msra.mxu0 0.0
    %651 = vmatprep.subr.mxu0 0.0
    %652 = vmatpush1.msra.mxu0 0.0
    %653 = vmatprep.subr.mxu0 0.0
    %654 = vmatpush1.msra.mxu0 0.0
    %655 = vmatprep.subr.mxu0 0.0
    %656 = vmatpush1.msra.mxu0 0.0
    %657 = vmatprep.subr.mxu0 0.0
    %658 = vmatpush1.msra.mxu0 0.0
    %659 = vmatprep.subr.mxu0 0.0
    %660 = vmatpush1.msra.mxu0 0.0
    %661 = vmatprep.subr.mxu0 0.0
    %662 = vmatpush1.msra.mxu0 0.0
    %663 = vmatprep.subr.mxu0 0.0
    %664 = vmatpush1.msra.mxu0 0.0
    %665 = vmatprep.mubr.f32.mxu0 0.0
    %666 = vmatmul.mubr.f32.gmra.mrb[0].mxu0 %v599
    %v667 = vpop.f32.mrb[0].mxu0
    %v668 = vadd.f32 %v595, %v667
    %v669 = vpop.f32.mrb[0].mxu0
    %670 = vdwg.mxu0
    %v671 = vrot.slane %v518, 1
    %v672 = vsel %vm194, 0.0, %v671
    %v674 = vsel %vm524, %v672, 0
    %676 = vmatprep.subr.mxu0 0.0
    %677 = vmatpush1.msra.mxu0 %v521
    %678 = vmatprep.subr.mxu0 0.0
    %679 = vmatpush1.msra.mxu0 0.0
    %680 = vmatprep.subr.mxu0 0.0
    %681 = vmatpush1.msra.mxu0 0.0
    %682 = vmatprep.subr.mxu0 0.0
    %683 = vmatpush1.msra.mxu0 0.0
    %684 = vmatprep.subr.mxu0 0.0
    %685 = vmatpush1.msra.mxu0 0.0
    %686 = vmatprep.subr.mxu0 0.0
    %687 = vmatpush1.msra.mxu0 0.0
    %688 = vmatprep.subr.mxu0 0.0
    %689 = vmatpush1.msra.mxu0 0.0
    %690 = vmatprep.subr.mxu0 0.0
    %691 = vmatpush1.msra.mxu0 0.0
    %692 = vmatprep.subr.mxu0 0.0
    %693 = vmatpush1.msra.mxu0 0.0
    %694 = vmatprep.subr.mxu0 0.0
    %695 = vmatpush1.msra.mxu0 0.0
    %696 = vmatprep.subr.mxu0 0.0
    %697 = vmatpush1.msra.mxu0 0.0
    %698 = vmatprep.subr.mxu0 0.0
    %699 = vmatpush1.msra.mxu0 0.0
    %700 = vmatprep.subr.mxu0 0.0
    %701 = vmatpush1.msra.mxu0 0.0
    %702 = vmatprep.subr.mxu0 0.0
    %703 = vmatpush1.msra.mxu0 0.0
    %704 = vmatprep.subr.mxu0 0.0
    %705 = vmatpush1.msra.mxu0 0.0
    %706 = vmatprep.subr.mxu0 0.0
    %707 = vmatpush1.msra.mxu0 0.0
    %708 = vmatprep.subr.mxu0 0.0
    %709 = vmatpush1.msra.mxu0 0.0
    %710 = vmatprep.subr.mxu0 0.0
    %711 = vmatpush1.msra.mxu0 0.0
    %712 = vmatprep.subr.mxu0 0.0
    %713 = vmatpush1.msra.mxu0 0.0
    %714 = vmatprep.subr.mxu0 0.0
    %715 = vmatpush1.msra.mxu0 0.0
    %716 = vmatprep.subr.mxu0 0.0
    %717 = vmatpush1.msra.mxu0 0.0
    %718 = vmatprep.subr.mxu0 0.0
    %719 = vmatpush1.msra.mxu0 0.0
    %720 = vmatprep.subr.mxu0 0.0
    %721 = vmatpush1.msra.mxu0 0.0
    %722 = vmatprep.subr.mxu0 0.0
    %723 = vmatpush1.msra.mxu0 0.0
    %724 = vmatprep.subr.mxu0 0.0
    %725 = vmatpush1.msra.mxu0 0.0
    %726 = vmatprep.subr.mxu0 0.0
    %727 = vmatpush1.msra.mxu0 0.0
    %728 = vmatprep.subr.mxu0 0.0
    %729 = vmatpush1.msra.mxu0 0.0
    %730 = vmatprep.subr.mxu0 0.0
    %731 = vmatpush1.msra.mxu0 0.0
    %732 = vmatprep.subr.mxu0 0.0
    %733 = vmatpush1.msra.mxu0 0.0
    %734 = vmatprep.subr.mxu0 0.0
    %735 = vmatpush1.msra.mxu0 0.0
    %736 = vmatprep.subr.mxu0 0.0
    %737 = vmatpush1.msra.mxu0 0.0
    %738 = vmatprep.subr.mxu0 0.0
    %739 = vmatpush1.msra.mxu0 0.0
    %740 = vmatprep.mubr.f32.mxu0 0.0
    %741 = vmatmul.mubr.f32.gmra.mrb[0].mxu0 %v674
    %v742 = vpop.f32.mrb[0].mxu0
    %v743 = vadd.f32 0.0, %v742
    %v744 = vpop.f32.mrb[0].mxu0
    %745 = vdwg.mxu0
    %v746 = vadd.f32 %v668, %v743
    %v747 = vld [vmem:[%s1 + $0x124] sm:$0x1]
    %v748 = vlaneseq
    %v749 = vshrl.u32 %v748, 7
    %v750 = vsub.s32 0, %v749
    %v751 = vrot.slane %v747, %v750
    %v752 = vadd.f32 %v746, %v751
    %vm753 = vcmp.gt.f32.partialorder %v752, 0.0
    %v754 = vmul.f32 %v752, 0.02
    %v755 = vsel %vm753, %v752, %v754
    %v756 = vld [vmem:[%s1 + $0x108] sm:$0xf]
    %v757 = vld [vmem:[%s1 + $0x10c] sm:$0xf]
    %v758 = vld [vmem:[%s1 + $0x110] sm:$0xf]
    %v759 = vrot.slane %v755, 7
    %v760 = vsel %vm43, 0.0, %v759
    %vm761 = vcmask 31744
    %v763 = vsel %vm761, %v755, 0
    %vm765 = vcmask 1043456
    %v767 = vsel %vm765, %v757, 0
    %769 = vmatprep.subr.mxu0 0.0
    %770 = vmatpush1.msra.mxu0 %v767
    %771 = vmatprep.subr.mxu0 0.0
    %772 = vmatpush1.msra.mxu0 0.0
    %773 = vmatprep.subr.mxu0 0.0
    %774 = vmatpush1.msra.mxu0 0.0
    %775 = vmatprep.subr.mxu0 0.0
    %776 = vmatpush1.msra.mxu0 0.0
    %777 = vmatprep.subr.mxu0 0.0
    %778 = vmatpush1.msra.mxu0 0.0
    %779 = vmatprep.subr.mxu0 0.0
    %780 = vmatpush1.msra.mxu0 0.0
    %781 = vmatprep.subr.mxu0 0.0
    %782 = vmatpush1.msra.mxu0 0.0
    %783 = vmatprep.subr.mxu0 0.0
    %784 = vmatpush1.msra.mxu0 0.0
    %785 = vmatprep.subr.mxu0 0.0
    %786 = vmatpush1.msra.mxu0 0.0
    %787 = vmatprep.subr.mxu0 0.0
    %788 = vmatpush1.msra.mxu0 0.0
    %789 = vmatprep.subr.mxu0 0.0
    %790 = vmatpush1.msra.mxu0 0.0
    %791 = vmatprep.subr.mxu0 0.0
    %792 = vmatpush1.msra.mxu0 0.0
    %793 = vmatprep.subr.mxu0 0.0
    %794 = vmatpush1.msra.mxu0 0.0
    %795 = vmatprep.subr.mxu0 0.0
    %796 = vmatpush1.msra.mxu0 0.0
    %797 = vmatprep.subr.mxu0 0.0
    %798 = vmatpush1.msra.mxu0 0.0
    %799 = vmatprep.subr.mxu0 0.0
    %800 = vmatpush1.msra.mxu0 0.0
    %801 = vmatprep.subr.mxu0 0.0
    %802 = vmatpush1.msra.mxu0 0.0
    %803 = vmatprep.subr.mxu0 0.0
    %804 = vmatpush1.msra.mxu0 0.0
    %805 = vmatprep.subr.mxu0 0.0
    %806 = vmatpush1.msra.mxu0 0.0
    %807 = vmatprep.subr.mxu0 0.0
    %808 = vmatpush1.msra.mxu0 0.0
    %809 = vmatprep.subr.mxu0 0.0
    %810 = vmatpush1.msra.mxu0 0.0
    %811 = vmatprep.subr.mxu0 0.0
    %812 = vmatpush1.msra.mxu0 0.0
    %813 = vmatprep.subr.mxu0 0.0
    %814 = vmatpush1.msra.mxu0 0.0
    %815 = vmatprep.subr.mxu0 0.0
    %816 = vmatpush1.msra.mxu0 0.0
    %817 = vmatprep.subr.mxu0 0.0
    %818 = vmatpush1.msra.mxu0 0.0
    %819 = vmatprep.subr.mxu0 0.0
    %820 = vmatpush1.msra.mxu0 0.0
    %821 = vmatprep.subr.mxu0 0.0
    %822 = vmatpush1.msra.mxu0 0.0
    %823 = vmatprep.subr.mxu0 0.0
    %824 = vmatpush1.msra.mxu0 0.0
    %825 = vmatprep.subr.mxu0 0.0
    %826 = vmatpush1.msra.mxu0 0.0
    %827 = vmatprep.subr.mxu0 0.0
    %828 = vmatpush1.msra.mxu0 0.0
    %829 = vmatprep.subr.mxu0 0.0
    %830 = vmatpush1.msra.mxu0 0.0
    %831 = vmatprep.subr.mxu0 0.0
    %832 = vmatpush1.msra.mxu0 0.0
    %833 = vmatprep.mubr.f32.mxu0 0.0
    %834 = vmatmul.mubr.f32.gmra.mrb[0].mxu0 %v763
    %v835 = vpop.f32.mrb[0].mxu0
    %v836 = vadd.f32 0.0, %v835
    %v837 = vpop.f32.mrb[0].mxu0
    %838 = vdwg.mxu0
    %v840 = vsel %vm761, %v760, 0
    %v843 = vsel %vm765, %v756, 0
    %845 = vmatprep.subr.mxu0 0.0
    %846 = vmatpush1.msra.mxu0 %v843
    %847 = vmatprep.subr.mxu0 0.0
    %848 = vmatpush1.msra.mxu0 0.0
    %849 = vmatprep.subr.mxu0 0.0
    %850 = vmatpush1.msra.mxu0 0.0
    %851 = vmatprep.subr.mxu0 0.0
    %852 = vmatpush1.msra.mxu0 0.0
    %853 = vmatprep.subr.mxu0 0.0
    %854 = vmatpush1.msra.mxu0 0.0
    %855 = vmatprep.subr.mxu0 0.0
    %856 = vmatpush1.msra.mxu0 0.0
    %857 = vmatprep.subr.mxu0 0.0
    %858 = vmatpush1.msra.mxu0 0.0
    %859 = vmatprep.subr.mxu0 0.0
    %860 = vmatpush1.msra.mxu0 0.0
    %861 = vmatprep.subr.mxu0 0.0
    %862 = vmatpush1.msra.mxu0 0.0
    %863 = vmatprep.subr.mxu0 0.0
    %864 = vmatpush1.msra.mxu0 0.0
    %865 = vmatprep.subr.mxu0 0.0
    %866 = vmatpush1.msra.mxu0 0.0
    %867 = vmatprep.subr.mxu0 0.0
    %868 = vmatpush1.msra.mxu0 0.0
    %869 = vmatprep.subr.mxu0 0.0
    %870 = vmatpush1.msra.mxu0 0.0
    %871 = vmatprep.subr.mxu0 0.0
    %872 = vmatpush1.msra.mxu0 0.0
    %873 = vmatprep.subr.mxu0 0.0
    %874 = vmatpush1.msra.mxu0 0.0
    %875 = vmatprep.subr.mxu0 0.0
    %876 = vmatpush1.msra.mxu0 0.0
    %877 = vmatprep.subr.mxu0 0.0
    %878 = vmatpush1.msra.mxu0 0.0
    %879 = vmatprep.subr.mxu0 0.0
    %880 = vmatpush1.msra.mxu0 0.0
    %881 = vmatprep.subr.mxu0 0.0
    %882 = vmatpush1.msra.mxu0 0.0
    %883 = vmatprep.subr.mxu0 0.0
    %884 = vmatpush1.msra.mxu0 0.0
    %885 = vmatprep.subr.mxu0 0.0
    %886 = vmatpush1.msra.mxu0 0.0
    %887 = vmatprep.subr.mxu0 0.0
    %888 = vmatpush1.msra.mxu0 0.0
    %889 = vmatprep.subr.mxu0 0.0
    %890 = vmatpush1.msra.mxu0 0.0
    %891 = vmatprep.subr.mxu0 0.0
    %892 = vmatpush1.msra.mxu0 0.0
    %893 = vmatprep.subr.mxu0 0.0
    %894 = vmatpush1.msra.mxu0 0.0
    %895 = vmatprep.subr.mxu0 0.0
    %896 = vmatpush1.msra.mxu0 0.0
    %897 = vmatprep.subr.mxu0 0.0
    %898 = vmatpush1.msra.mxu0 0.0
    %899 = vmatprep.subr.mxu0 0.0
    %900 = vmatpush1.msra.mxu0 0.0
    %901 = vmatprep.subr.mxu0 0.0
    %902 = vmatpush1.msra.mxu0 0.0
    %903 = vmatprep.subr.mxu0 0.0
    %904 = vmatpush1.msra.mxu0 0.0
    %905 = vmatprep.subr.mxu0 0.0
    %906 = vmatpush1.msra.mxu0 0.0
    %907 = vmatprep.subr.mxu0 0.0
    %908 = vmatpush1.msra.mxu0 0.0
    %909 = vmatprep.mubr.f32.mxu0 0.0
    %910 = vmatmul.mubr.f32.gmra.mrb[0].mxu0 %v840
    %v911 = vpop.f32.mrb[0].mxu0
    %v912 = vadd.f32 %v836, %v911
    %v913 = vpop.f32.mrb[0].mxu0
    %914 = vdwg.mxu0
    %v915 = vrot.slane %v755, 1
    %v916 = vsel %vm194, 0.0, %v915
    %v918 = vsel %vm761, %v916, 0
    %v921 = vsel %vm765, %v758, 0
    %923 = vmatprep.subr.mxu0 0.0
    %924 = vmatpush1.msra.mxu0 %v921
    %925 = vmatprep.subr.mxu0 0.0
    %926 = vmatpush1.msra.mxu0 0.0
    %927 = vmatprep.subr.mxu0 0.0
    %928 = vmatpush1.msra.mxu0 0.0
    %929 = vmatprep.subr.mxu0 0.0
    %930 = vmatpush1.msra.mxu0 0.0
    %931 = vmatprep.subr.mxu0 0.0
    %932 = vmatpush1.msra.mxu0 0.0
    %933 = vmatprep.subr.mxu0 0.0
    %934 = vmatpush1.msra.mxu0 0.0
    %935 = vmatprep.subr.mxu0 0.0
    %936 = vmatpush1.msra.mxu0 0.0
    %937 = vmatprep.subr.mxu0 0.0
    %938 = vmatpush1.msra.mxu0 0.0
    %939 = vmatprep.subr.mxu0 0.0
    %940 = vmatpush1.msra.mxu0 0.0
    %941 = vmatprep.subr.mxu0 0.0
    %942 = vmatpush1.msra.mxu0 0.0
    %943 = vmatprep.subr.mxu0 0.0
    %944 = vmatpush1.msra.mxu0 0.0
    %945 = vmatprep.subr.mxu0 0.0
    %946 = vmatpush1.msra.mxu0 0.0
    %947 = vmatprep.subr.mxu0 0.0
    %948 = vmatpush1.msra.mxu0 0.0
    %949 = vmatprep.subr.mxu0 0.0
    %950 = vmatpush1.msra.mxu0 0.0
    %951 = vmatprep.subr.mxu0 0.0
    %952 = vmatpush1.msra.mxu0 0.0
    %953 = vmatprep.subr.mxu0 0.0
    %954 = vmatpush1.msra.mxu0 0.0
    %955 = vmatprep.subr.mxu0 0.0
    %956 = vmatpush1.msra.mxu0 0.0
    %957 = vmatprep.subr.mxu0 0.0
    %958 = vmatpush1.msra.mxu0 0.0
    %959 = vmatprep.subr.mxu0 0.0
    %960 = vmatpush1.msra.mxu0 0.0
    %961 = vmatprep.subr.mxu0 0.0
    %962 = vmatpush1.msra.mxu0 0.0
    %963 = vmatprep.subr.mxu0 0.0
    %964 = vmatpush1.msra.mxu0 0.0
    %965 = vmatprep.subr.mxu0 0.0
    %966 = vmatpush1.msra.mxu0 0.0
    %967 = vmatprep.subr.mxu0 0.0
    %968 = vmatpush1.msra.mxu0 0.0
    %969 = vmatprep.subr.mxu0 0.0
    %970 = vmatpush1.msra.mxu0 0.0
    %971 = vmatprep.subr.mxu0 0.0
    %972 = vmatpush1.msra.mxu0 0.0
    %973 = vmatprep.subr.mxu0 0.0
    %974 = vmatpush1.msra.mxu0 0.0
    %975 = vmatprep.subr.mxu0 0.0
    %976 = vmatpush1.msra.mxu0 0.0
    %977 = vmatprep.subr.mxu0 0.0
    %978 = vmatpush1.msra.mxu0 0.0
    %979 = vmatprep.subr.mxu0 0.0
    %980 = vmatpush1.msra.mxu0 0.0
    %981 = vmatprep.subr.mxu0 0.0
    %982 = vmatpush1.msra.mxu0 0.0
    %983 = vmatprep.subr.mxu0 0.0
    %984 = vmatpush1.msra.mxu0 0.0
    %985 = vmatprep.subr.mxu0 0.0
    %986 = vmatpush1.msra.mxu0 0.0
    %987 = vmatprep.mubr.f32.mxu0 0.0
    %988 = vmatmul.mubr.f32.gmra.mrb[0].mxu0 %v918
    %v989 = vpop.f32.mrb[0].mxu0
    %v990 = vadd.f32 0.0, %v989
    %v991 = vpop.f32.mrb[0].mxu0
    %992 = vdwg.mxu0
    %v993 = vadd.f32 %v912, %v990
    %v994 = vld [vmem:[%s1 + $0x125] sm:$0x1]
    %v995 = vlaneseq
    %v996 = vshrl.u32 %v995, 7
    %v997 = vsub.s32 0, %v996
    %v998 = vrot.slane %v994, %v997
    %v999 = vadd.f32 %v993, %v998
    %vm1000 = vcmp.gt.f32.partialorder %v999, 0.0
    %v1001 = vmul.f32 %v999, 0.02
    %v1002 = vsel %vm1000, %v999, %v1001
    %v1003 = vld [vmem:[%s1 + $0x114] sm:$0x3]
    %v1004 = vld [vmem:[%s1 + $0x116] sm:$0x3]
    %v1005 = vld [vmem:[%s1 + $0x118] sm:$0x3]
    %v1006 = vrot.slane %v1002, 7
    %v1007 = vsel %vm43, 0.0, %v1006
    %vm1008 = vcmask 15360
    %v1010 = vsel %vm1008, %v1002, 0
    %vm1012 = vcmask 1041408
    %v1014 = vsel %vm1012, %v1004, 0
    %1016 = vmatprep.subr.mxu0 0.0
    %1017 = vmatpush1.msra.mxu0 %v1014
    %1018 = vmatprep.subr.mxu0 0.0
    %1019 = vmatpush1.msra.mxu0 0.0
    %1020 = vmatprep.subr.mxu0 0.0
    %1021 = vmatpush1.msra.mxu0 0.0
    %1022 = vmatprep.subr.mxu0 0.0
    %1023 = vmatpush1.msra.mxu0 0.0
    %1024 = vmatprep.subr.mxu0 0.0
    %1025 = vmatpush1.msra.mxu0 0.0
    %1026 = vmatprep.subr.mxu0 0.0
    %1027 = vmatpush1.msra.mxu0 0.0
    %1028 = vmatprep.subr.mxu0 0.0
    %1029 = vmatpush1.msra.mxu0 0.0
    %1030 = vmatprep.subr.mxu0 0.0
    %1031 = vmatpush1.msra.mxu0 0.0
    %1032 = vmatprep.subr.mxu0 0.0
    %1033 = vmatpush1.msra.mxu0 0.0
    %1034 = vmatprep.subr.mxu0 0.0
    %1035 = vmatpush1.msra.mxu0 0.0
    %1036 = vmatprep.subr.mxu0 0.0
    %1037 = vmatpush1.msra.mxu0 0.0
    %1038 = vmatprep.subr.mxu0 0.0
    %1039 = vmatpush1.msra.mxu0 0.0
    %1040 = vmatprep.subr.mxu0 0.0
    %1041 = vmatpush1.msra.mxu0 0.0
    %1042 = vmatprep.subr.mxu0 0.0
    %1043 = vmatpush1.msra.mxu0 0.0
    %1044 = vmatprep.subr.mxu0 0.0
    %1045 = vmatpush1.msra.mxu0 0.0
    %1046 = vmatprep.subr.mxu0 0.0
    %1047 = vmatpush1.msra.mxu0 0.0
    %1048 = vmatprep.subr.mxu0 0.0
    %1049 = vmatpush1.msra.mxu0 0.0
    %1050 = vmatprep.subr.mxu0 0.0
    %1051 = vmatpush1.msra.mxu0 0.0
    %1052 = vmatprep.subr.mxu0 0.0
    %1053 = vmatpush1.msra.mxu0 0.0
    %1054 = vmatprep.subr.mxu0 0.0
    %1055 = vmatpush1.msra.mxu0 0.0
    %1056 = vmatprep.subr.mxu0 0.0
    %1057 = vmatpush1.msra.mxu0 0.0
    %1058 = vmatprep.subr.mxu0 0.0
    %1059 = vmatpush1.msra.mxu0 0.0
    %1060 = vmatprep.subr.mxu0 0.0
    %1061 = vmatpush1.msra.mxu0 0.0
    %1062 = vmatprep.subr.mxu0 0.0
    %1063 = vmatpush1.msra.mxu0 0.0
    %1064 = vmatprep.subr.mxu0 0.0
    %1065 = vmatpush1.msra.mxu0 0.0
    %1066 = vmatprep.subr.mxu0 0.0
    %1067 = vmatpush1.msra.mxu0 0.0
    %1068 = vmatprep.subr.mxu0 0.0
    %1069 = vmatpush1.msra.mxu0 0.0
    %1070 = vmatprep.subr.mxu0 0.0
    %1071 = vmatpush1.msra.mxu0 0.0
    %1072 = vmatprep.subr.mxu0 0.0
    %1073 = vmatpush1.msra.mxu0 0.0
    %1074 = vmatprep.subr.mxu0 0.0
    %1075 = vmatpush1.msra.mxu0 0.0
    %1076 = vmatprep.subr.mxu0 0.0
    %1077 = vmatpush1.msra.mxu0 0.0
    %1078 = vmatprep.subr.mxu0 0.0
    %1079 = vmatpush1.msra.mxu0 0.0
    %1080 = vmatprep.mubr.f32.mxu0 0.0
    %1081 = vmatmul.mubr.f32.gmra.mrb[0].mxu0 %v1010
    %v1082 = vpop.f32.mrb[0].mxu0
    %v1083 = vadd.f32 0.0, %v1082
    %v1084 = vpop.f32.mrb[0].mxu0
    %1085 = vdwg.mxu0
    %v1087 = vsel %vm1008, %v1007, 0
    %v1090 = vsel %vm1012, %v1003, 0
    %1092 = vmatprep.subr.mxu0 0.0
    %1093 = vmatpush1.msra.mxu0 %v1090
    %1094 = vmatprep.subr.mxu0 0.0
    %1095 = vmatpush1.msra.mxu0 0.0
    %1096 = vmatprep.subr.mxu0 0.0
    %1097 = vmatpush1.msra.mxu0 0.0
    %1098 = vmatprep.subr.mxu0 0.0
    %1099 = vmatpush1.msra.mxu0 0.0
    %1100 = vmatprep.subr.mxu0 0.0
    %1101 = vmatpush1.msra.mxu0 0.0
    %1102 = vmatprep.subr.mxu0 0.0
    %1103 = vmatpush1.msra.mxu0 0.0
    %1104 = vmatprep.subr.mxu0 0.0
    %1105 = vmatpush1.msra.mxu0 0.0
    %1106 = vmatprep.subr.mxu0 0.0
    %1107 = vmatpush1.msra.mxu0 0.0
    %1108 = vmatprep.subr.mxu0 0.0
    %1109 = vmatpush1.msra.mxu0 0.0
    %1110 = vmatprep.subr.mxu0 0.0
    %1111 = vmatpush1.msra.mxu0 0.0
    %1112 = vmatprep.subr.mxu0 0.0
    %1113 = vmatpush1.msra.mxu0 0.0
    %1114 = vmatprep.subr.mxu0 0.0
    %1115 = vmatpush1.msra.mxu0 0.0
    %1116 = vmatprep.subr.mxu0 0.0
    %1117 = vmatpush1.msra.mxu0 0.0
    %1118 = vmatprep.subr.mxu0 0.0
    %1119 = vmatpush1.msra.mxu0 0.0
    %1120 = vmatprep.subr.mxu0 0.0
    %1121 = vmatpush1.msra.mxu0 0.0
    %1122 = vmatprep.subr.mxu0 0.0
    %1123 = vmatpush1.msra.mxu0 0.0
    %1124 = vmatprep.subr.mxu0 0.0
    %1125 = vmatpush1.msra.mxu0 0.0
    %1126 = vmatprep.subr.mxu0 0.0
    %1127 = vmatpush1.msra.mxu0 0.0
    %1128 = vmatprep.subr.mxu0 0.0
    %1129 = vmatpush1.msra.mxu0 0.0
    %1130 = vmatprep.subr.mxu0 0.0
    %1131 = vmatpush1.msra.mxu0 0.0
    %1132 = vmatprep.subr.mxu0 0.0
    %1133 = vmatpush1.msra.mxu0 0.0
    %1134 = vmatprep.subr.mxu0 0.0
    %1135 = vmatpush1.msra.mxu0 0.0
    %1136 = vmatprep.subr.mxu0 0.0
    %1137 = vmatpush1.msra.mxu0 0.0
    %1138 = vmatprep.subr.mxu0 0.0
    %1139 = vmatpush1.msra.mxu0 0.0
    %1140 = vmatprep.subr.mxu0 0.0
    %1141 = vmatpush1.msra.mxu0 0.0
    %1142 = vmatprep.subr.mxu0 0.0
    %1143 = vmatpush1.msra.mxu0 0.0
    %1144 = vmatprep.subr.mxu0 0.0
    %1145 = vmatpush1.msra.mxu0 0.0
    %1146 = vmatprep.subr.mxu0 0.0
    %1147 = vmatpush1.msra.mxu0 0.0
    %1148 = vmatprep.subr.mxu0 0.0
    %1149 = vmatpush1.msra.mxu0 0.0
    %1150 = vmatprep.subr.mxu0 0.0
    %1151 = vmatpush1.msra.mxu0 0.0
    %1152 = vmatprep.subr.mxu0 0.0
    %1153 = vmatpush1.msra.mxu0 0.0
    %1154 = vmatprep.subr.mxu0 0.0
    %1155 = vmatpush1.msra.mxu0 0.0
    %1156 = vmatprep.mubr.f32.mxu0 0.0
    %1157 = vmatmul.mubr.f32.gmra.mrb[0].mxu0 %v1087
    %v1158 = vpop.f32.mrb[0].mxu0
    %v1159 = vadd.f32 %v1083, %v1158
    %v1160 = vpop.f32.mrb[0].mxu0
    %1161 = vdwg.mxu0
    %v1162 = vrot.slane %v1002, 1
    %v1163 = vsel %vm194, 0.0, %v1162
    %v1165 = vsel %vm1008, %v1163, 0
    %v1168 = vsel %vm1012, %v1005, 0
    %1170 = vmatprep.subr.mxu0 0.0
    %1171 = vmatpush1.msra.mxu0 %v1168
    %1172 = vmatprep.subr.mxu0 0.0
    %1173 = vmatpush1.msra.mxu0 0.0
    %1174 = vmatprep.subr.mxu0 0.0
    %1175 = vmatpush1.msra.mxu0 0.0
    %1176 = vmatprep.subr.mxu0 0.0
    %1177 = vmatpush1.msra.mxu0 0.0
    %1178 = vmatprep.subr.mxu0 0.0
    %1179 = vmatpush1.msra.mxu0 0.0
    %1180 = vmatprep.subr.mxu0 0.0
    %1181 = vmatpush1.msra.mxu0 0.0
    %1182 = vmatprep.subr.mxu0 0.0
    %1183 = vmatpush1.msra.mxu0 0.0
    %1184 = vmatprep.subr.mxu0 0.0
    %1185 = vmatpush1.msra.mxu0 0.0
    %1186 = vmatprep.subr.mxu0 0.0
    %1187 = vmatpush1.msra.mxu0 0.0
    %1188 = vmatprep.subr.mxu0 0.0
    %1189 = vmatpush1.msra.mxu0 0.0
    %1190 = vmatprep.subr.mxu0 0.0
    %1191 = vmatpush1.msra.mxu0 0.0
    %1192 = vmatprep.subr.mxu0 0.0
    %1193 = vmatpush1.msra.mxu0 0.0
    %1194 = vmatprep.subr.mxu0 0.0
    %1195 = vmatpush1.msra.mxu0 0.0
    %1196 = vmatprep.subr.mxu0 0.0
    %1197 = vmatpush1.msra.mxu0 0.0
    %1198 = vmatprep.subr.mxu0 0.0
    %1199 = vmatpush1.msra.mxu0 0.0
    %1200 = vmatprep.subr.mxu0 0.0
    %1201 = vmatpush1.msra.mxu0 0.0
    %1202 = vmatprep.subr.mxu0 0.0
    %1203 = vmatpush1.msra.mxu0 0.0
    %1204 = vmatprep.subr.mxu0 0.0
    %1205 = vmatpush1.msra.mxu0 0.0
    %1206 = vmatprep.subr.mxu0 0.0
    %1207 = vmatpush1.msra.mxu0 0.0
    %1208 = vmatprep.subr.mxu0 0.0
    %1209 = vmatpush1.msra.mxu0 0.0
    %1210 = vmatprep.subr.mxu0 0.0
    %1211 = vmatpush1.msra.mxu0 0.0
    %1212 = vmatprep.subr.mxu0 0.0
    %1213 = vmatpush1.msra.mxu0 0.0
    %1214 = vmatprep.subr.mxu0 0.0
    %1215 = vmatpush1.msra.mxu0 0.0
    %1216 = vmatprep.subr.mxu0 0.0
    %1217 = vmatpush1.msra.mxu0 0.0
    %1218 = vmatprep.subr.mxu0 0.0
    %1219 = vmatpush1.msra.mxu0 0.0
    %1220 = vmatprep.subr.mxu0 0.0
    %1221 = vmatpush1.msra.mxu0 0.0
    %1222 = vmatprep.subr.mxu0 0.0
    %1223 = vmatpush1.msra.mxu0 0.0
    %1224 = vmatprep.subr.mxu0 0.0
    %1225 = vmatpush1.msra.mxu0 0.0
    %1226 = vmatprep.subr.mxu0 0.0
    %1227 = vmatpush1.msra.mxu0 0.0
    %1228 = vmatprep.subr.mxu0 0.0
    %1229 = vmatpush1.msra.mxu0 0.0
    %1230 = vmatprep.subr.mxu0 0.0
    %1231 = vmatpush1.msra.mxu0 0.0
    %1232 = vmatprep.subr.mxu0 0.0
    %1233 = vmatpush1.msra.mxu0 0.0
    %1234 = vmatprep.mubr.f32.mxu0 0.0
    %1235 = vmatmul.mubr.f32.gmra.mrb[0].mxu0 %v1165
    %v1236 = vpop.f32.mrb[0].mxu0
    %v1237 = vadd.f32 0.0, %v1236
    %v1238 = vpop.f32.mrb[0].mxu0
    %1239 = vdwg.mxu0
    %v1240 = vadd.f32 %v1159, %v1237
    %v1241 = vld [vmem:[%s1 + $0x126] sm:$0x1]
    %v1242 = vlaneseq
    %v1243 = vshrl.u32 %v1242, 7
    %v1244 = vsub.s32 0, %v1243
    %v1245 = vrot.slane %v1241, %v1244
    %v1246 = vadd.f32 %v1240, %v1245
    %vm1247 = vcmp.gt.f32.partialorder %v1246, 0.0
    %v1248 = vmul.f32 %v1246, 0.02
    %v1249 = vsel %vm1247, %v1246, %v1248
    %v1250 = vld [vmem:[%s1 + $0x11a] sm:$0xff]
    %1252 = vset.pattern.permute.xlu0 0
    %1253 = vperm.xlu0 %1252, %v1249
    %v1254 = vpop.permute.xlu0 %1253
    %v1256 = vmul.f32 %v1250, %v1254
    %v1257 = vsel %vm524, %v1256, 0.0
    %v1258 = vrot.slane %v1257, 4
    %v1259 = vadd.f32 %v1257, %v1258
    %v1260 = vrot.slane %v1259, 2
    %v1261 = vadd.f32 %v1259, %v1260
    %v1262 = vrot.slane %v1261, 1
    %v1263 = vadd.f32 %v1261, %v1262
    %v1264 = vld [vmem:[%s1 + $0x127] sm:$0x1]
    %v1265 = vadd.f32 %v1263, %v1264
    %vm1266 = vcmask 57344
    %v1267 = vsel %vm1266, %v1265, -inf
    %1268 = vmax.xlane.f32.xlu0 %v1267
    %v1269 = vpop.xlane.xlu0 %1268
    %v1270 = vsub.f32 %v1265, %v1269
    %v1271 = vmul.f32 %v1270, 1.442695
    %v1272 = vpow.pop %v1271
    %v1273 = vsel %vm1266, %v1272, 0.0
    %1274 = vadd.xlane.f32.xlu0 %v1273
    %v1275 = vpop.xlane.xlu0 %1274
    %v1276 = vrcp.pop %v1275
    %v1277 = vmul.f32 %v1272, %v1276
    %v1279 = vsel %vm524, %v1277, 0
    %1281 = vmatprep.subr.mxu0 0.0
    %1282 = vmatpush1.msra.mxu0 %v12
    %1283 = vmatprep.subr.mxu0 0.0
    %1284 = vmatpush1.msra.mxu0 0.0
    %1285 = vmatprep.subr.mxu0 0.0
    %1286 = vmatpush1.msra.mxu0 0.0
    %1287 = vmatprep.subr.mxu0 0.0
    %1288 = vmatpush1.msra.mxu0 0.0
    %1289 = vmatprep.subr.mxu0 0.0
    %1290 = vmatpush1.msra.mxu0 0.0
    %1291 = vmatprep.subr.mxu0 0.0
    %1292 = vmatpush1.msra.mxu0 0.0
    %1293 = vmatprep.subr.mxu0 0.0
    %1294 = vmatpush1.msra.mxu0 0.0
    %1295 = vmatprep.subr.mxu0 0.0
    %1296 = vmatpush1.msra.mxu0 0.0
    %1297 = vmatprep.subr.mxu0 0.0
    %1298 = vmatpush1.msra.mxu0 0.0
    %1299 = vmatprep.subr.mxu0 0.0
    %1300 = vmatpush1.msra.mxu0 0.0
    %1301 = vmatprep.subr.mxu0 0.0
    %1302 = vmatpush1.msra.mxu0 0.0
    %1303 = vmatprep.subr.mxu0 0.0
    %1304 = vmatpush1.msra.mxu0 0.0
    %1305 = vmatprep.subr.mxu0 0.0
    %1306 = vmatpush1.msra.mxu0 0.0
    %1307 = vmatprep.subr.mxu0 0.0
    %1308 = vmatpush1.msra.mxu0 0.0
    %1309 = vmatprep.subr.mxu0 0.0
    %1310 = vmatpush1.msra.mxu0 0.0
    %1311 = vmatprep.subr.mxu0 0.0
    %1312 = vmatpush1.msra.mxu0 0.0
    %1313 = vmatprep.subr.mxu0 0.0
    %1314 = vmatpush1.msra.mxu0 0.0
    %1315 = vmatprep.subr.mxu0 0.0
    %1316 = vmatpush1.msra.mxu0 0.0
    %1317 = vmatprep.subr.mxu0 0.0
    %1318 = vmatpush1.msra.mxu0 0.0
    %1319 = vmatprep.subr.mxu0 0.0
    %1320 = vmatpush1.msra.mxu0 0.0
    %1321 = vmatprep.subr.mxu0 0.0
    %1322 = vmatpush1.msra.mxu0 0.0
    %1323 = vmatprep.subr.mxu0 0.0
    %1324 = vmatpush1.msra.mxu0 0.0
    %1325 = vmatprep.subr.mxu0 0.0
    %1326 = vmatpush1.msra.mxu0 0.0
    %1327 = vmatprep.subr.mxu0 0.0
    %1328 = vmatpush1.msra.mxu0 0.0
    %1329 = vmatprep.subr.mxu0 0.0
    %1330 = vmatpush1.msra.mxu0 0.0
    %1331 = vmatprep.subr.mxu0 0.0
    %1332 = vmatpush1.msra.mxu0 0.0
    %1333 = vmatprep.subr.mxu0 0.0
    %1334 = vmatpush1.msra.mxu0 0.0
    %1335 = vmatprep.subr.mxu0 0.0
    %1336 = vmatpush1.msra.mxu0 0.0
    %1337 = vmatprep.subr.mxu0 0.0
    %1338 = vmatpush1.msra.mxu0 0.0
    %1339 = vmatprep.subr.mxu0 0.0
    %1340 = vmatpush1.msra.mxu0 0.0
    %1341 = vmatprep.subr.mxu0 0.0
    %1342 = vmatpush1.msra.mxu0 0.0
    %1343 = vmatprep.subr.mxu0 0.0
    %1344 = vmatpush1.msra.mxu0 0.0
    %1345 = vmatprep.mubr.f32.mxu0 0.0
    %1346 = vmatmul.mubr.f32.gmra.mrb[0].mxu0 %v1279
    %v1347 = vpop.f32.mrb[0].mxu0
    %v1348 = vadd.f32 0.0, %v1347
    %v1349 = vpop.f32.mrb[0].mxu0
    %1350 = vdwg.mxu0
    %vm1351 = vcmask 516096
    %1352 = vst.msk [vmem:[#allocation2] sm:$0x1] %vm1351, %v1348
    // Predicated region
    $region10: #{audio_att_net.1} parent=1 // pred_check
      _
    $region11: #{audio_att_net.1} parent=1 // pred_check_branch
      %1354 = sbr.rel (0) target = $region13
    $region12: #{audio_att_net.1} parent=1 // pred_region
      %s1356 = ssub.s32 16, 16
      %1357 = vsyncadd [#allocation3], %s1356
      %s1359 = sshll.u32 [#allocation2], 4
      %s1360 = int_to_ptr.vmem [resolvable:$true] %s1359
      %1362 = dma.vmem_to_hbm [thread:$0]  %s1360, 16, %s2, [#allocation3]
    $region13: #{audio_att_net.1} parent=1 // pred_fallthru
      _
    // Predicated region
    $region14: #{audio_att_net.1} parent=1 // pred_check
      _
    $region15: #{audio_att_net.1} parent=1 // pred_check_branch
      %1364 = sbr.rel (0) target = $region17
    $region16: #{audio_att_net.1} parent=1 // pred_region
      %1365 = dma.done [#allocation3], 16
    $region17: #{audio_att_net.1} parent=1 // pred_fallthru
      _
    %1366 = vsyncpa [#allocation3], 1

</llo_original>
